<compile_context>
chip_gen: v6e
topology: v6e:2x2x1
jax: 0.10.0
libtpu: 0.0.40
codegen_flags: <defaults>
</compile_context>

<pallas_src>
import numpy as np
import jax
import jax.numpy as jnp
from jax import lax
from jax.experimental import pallas as pl
from jax.experimental.pallas import tpu as pltpu


def dkt_forward_pallas(x_emb, inputY, truth, params):
    T, B, E = x_emb.shape
    Q = inputY.shape[2]
    H = params["b_start"].shape[1]

    # Host-side flatten (free layout plumbing; avoids in-kernel relayouts).
    x_flat = x_emb.reshape(T * B, E)
    y_flat = inputY.reshape(T * B, Q)
    truth_flat = truth.reshape(T * B, 1)

    def kernel(x_ref, y_ref, truth_ref,
               b_start_ref, ws_ref, bs_ref, wi_ref, bi_ref,
               wh_ref, bh_ref, wp_ref, bp_ref,
               loss_ref, pred_ref, feat_sc):
        # ---- hoisted constants (read/broadcast once, not per unrolled step) --
        ws = ws_ref[...]                                   # (H, H)
        wh = wh_ref[...]                                   # (H, H)
        bs_b = jnp.broadcast_to(bs_ref[...], (B, H))
        bh_b = jnp.broadcast_to(bh_ref[...], (B, H))

        # ---- hoisted input projection: one (T*B,E)@(E,H) matmul -------------
        feat_sc[...] = jnp.dot(x_ref[...], wi_ref[...],
                               preferred_element_type=jnp.float32) + bi_ref[...]

        # start_layer(zeros(B,1)) == broadcast of the start-layer bias.
        state0 = jnp.broadcast_to(b_start_ref[...], (B, H))

        def step(t, state):
            off = t * B
            if B % 8 == 0:
                off = pl.multiple_of(off, 8)
            infeat = feat_sc[pl.ds(off, B), :]                       # (B, H)
            state_feat = jnp.dot(state, ws,
                                 preferred_element_type=jnp.float32) + bs_b
            combined = jnp.tanh(state_feat + infeat)
            h = jnp.dot(jnp.maximum(combined, 0.0), wh,
                        preferred_element_type=jnp.float32) + bh_b
            hidden = jnp.maximum(h, 0.0)                             # ReLU
            # TODO(synk): nn.Dropout(0.5) layers (embedding/hidden/pred) are
            # identity (eval-mode semantics) - no deterministic Pallas equivalent.

            # Overwrite slot t in place (input feature already consumed).
            feat_sc[pl.ds(off, B), :] = hidden
            return hidden

        lax.fori_loop(0, T, step, state0, unroll=True)

        # ---- deferred prediction / BCE: batched over all T*B rows -----------
        logits = jnp.dot(feat_sc[...], wp_ref[...],
                         preferred_element_type=jnp.float32) + bp_ref[...]
        pred = jnp.sum(jax.nn.sigmoid(logits) * y_ref[...],
                       axis=1, keepdims=True)                        # (T*B, 1)
        tr = truth_ref[...]                                          # (T*B, 1)

        # F.binary_cross_entropy(reduction='sum'), PyTorch log clamp at -100.
        log_p = jnp.maximum(jnp.log(pred), -100.0)
        log_1p = jnp.maximum(jnp.log(1.0 - pred), -100.0)
        bce = -(tr * log_p + (1.0 - tr) * log_1p)

        pred_ref[...] = pred                                         # single store
        loss_ref[...] = jnp.sum(bce, keepdims=True)                  # single store

    vmem_spec = pl.BlockSpec(memory_space=pltpu.MemorySpace.VMEM)

    loss, preds = pl.pallas_call(
        kernel,
        out_shape=(jax.ShapeDtypeStruct((1, 1), jnp.float32),
                   jax.ShapeDtypeStruct((T * B, 1), jnp.float32)),
        in_specs=[vmem_spec] * 12,
        out_specs=(vmem_spec, vmem_spec),
        scratch_shapes=[pltpu.VMEM((T * B, H), jnp.float32)],
    )(x_flat, y_flat, truth_flat,
      params["b_start"], params["w_state"], params["b_state"],
      params["w_input"], params["b_input"],
      params["w_hidden"], params["b_hidden"],
      params["w_pred"], params["b_pred"])
    return loss[0, 0], preds.reshape(T, B)


def dkt_reference(x_emb, inputY, truth, params):
    """Pure-JAX reference of the same forward pass."""
    batch = x_emb.shape[1]
    n_hidden = params["b_start"].shape[1]
    state = jnp.broadcast_to(params["b_start"], (batch, n_hidden))
    total = jnp.float32(0.0)
    preds = []
    for t in range(x_emb.shape[0]):
        sf = state @ params["w_state"] + params["b_state"]
        inf = x_emb[t] @ params["w_input"] + params["b_input"]
        combined = jnp.tanh(sf + inf)
        h = jnp.maximum(combined, 0.0) @ params["w_hidden"] + params["b_hidden"]
        hidden = jnp.maximum(h, 0.0)
        logits = hidden @ params["w_pred"] + params["b_pred"]
        p = jnp.sum(jax.nn.sigmoid(logits) * inputY[t], axis=1)
        tr = truth[t, :, 0]
        lp = jnp.maximum(jnp.log(p), -100.0)
        l1p = jnp.maximum(jnp.log(1.0 - p), -100.0)
        total = total + jnp.sum(-(tr * lp + (1.0 - tr) * l1p))
        preds.append(p)
        state = hidden
    return total, jnp.stack(preds)


def preprocess_batch(records, n_questions):
    """Replicates the per-timestep Python preprocessing from ImprovedDKT.forward."""
    batch_size = len(records)
    n_steps = max(r["n_answers"] for r in records) - 1
    inputX = np.zeros((n_steps, batch_size), dtype=np.int32)
    inputY = np.zeros((n_steps, batch_size, n_questions), dtype=np.float32)
    truth = np.zeros((n_steps, batch_size, 1), dtype=np.float32)
    valid = np.zeros((n_steps, batch_size), dtype=np.float32)
    for t in range(n_steps):
        for i, r in enumerate(records):
            if t + 1 < r["n_answers"]:
                valid[t, i] = 1.0
                q_cur, q_next = r["questionId"][t], r["questionId"][t + 1]
                c_cur, c_next = r["correct"][t], r["correct"][t + 1]
                idx = int(2 * (q_cur - 1) + c_cur)
                if idx < 0 or idx >= 2 * n_questions:
                    continue
                inputX[t, i] = idx
                inputY[t, i, q_next - 1] = 1.0
                truth[t, i, 0] = float(c_next)
    return inputX, inputY, truth, valid, n_steps


def init_params(key, n_questions, n_hidden, embed_dim):
    ks = jax.random.split(key, 12)

    def linear(kw, kb, fin, fout):
        scale = 1.0 / np.sqrt(fin)
        w = jax.random.uniform(kw, (fin, fout), jnp.float32, -scale, scale)
        b = jax.random.uniform(kb, (1, fout), jnp.float32, -scale, scale)
        return w, b

    w_state, b_state = linear(ks[0], ks[1], n_hidden, n_hidden)
    w_input, b_input = linear(ks[2], ks[3], embed_dim, n_hidden)
    w_hidden, b_hidden = linear(ks[4], ks[5], n_hidden, n_hidden)
    w_pred, b_pred = linear(ks[6], ks[7], n_hidden, n_questions)
    _, b_start = linear(ks[8], ks[9], 1, n_hidden)   # start_layer(zeros) only uses the bias
    emb = jax.random.normal(ks[10], (2 * n_questions, embed_dim), jnp.float32)
    return dict(emb=emb, b_start=b_start,
                w_state=w_state, b_state=b_state,
                w_input=w_input, b_input=b_input,
                w_hidden=w_hidden, b_hidden=b_hidden,
                w_pred=w_pred, b_pred=b_pred)


if __name__ == "__main__":
    n_questions = 16
    n_hidden = 32
    embed_dim = 64
    batch_size = 8
    max_answers = 9          # -> n_steps = 8

    key = jax.random.PRNGKey(0)
    k_param, k_len, k_q, k_c = jax.random.split(key, 4)

    # Build a deterministic synthetic batch of student records.
    # np.array(...) (not asarray) -> writable host copy of the JAX array.
    lens = np.array(jax.random.randint(k_len, (batch_size,), 3, max_answers + 1))
    lens[0] = max_answers    # fix the max so n_steps is stable
    qids = np.asarray(jax.random.randint(k_q, (batch_size, max_answers), 1, n_questions + 1))
    corr = np.asarray(jax.random.randint(k_c, (batch_size, max_answers), 0, 2))
    records = [
        {"n_answers": int(lens[i]),
         "questionId": [int(q) for q in qids[i, :int(lens[i])]],
         "correct": [int(c) for c in corr[i, :int(lens[i])]]}
        for i in range(batch_size)
    ]

    inputX, inputY, truth, valid, n_steps = preprocess_batch(records, n_questions)

    params = init_params(k_param, n_questions, n_hidden, embed_dim)

    # Embedding gather (glue); embedding_dropout is identity in eval mode.
    x_emb = jnp.take(params["emb"], jnp.asarray(inputX), axis=0)   # (T, B, E)
    inputY_j = jnp.asarray(inputY)
    truth_j = jnp.asarray(truth)

    total_loss, preds = dkt_forward_pallas(x_emb, inputY_j, truth_j, params)
    total_loss = jax.block_until_ready(total_loss)
    preds = jax.block_until_ready(preds)
    total_tests = float(valid.sum())   # second element of the module's return

    ref_loss, ref_preds = dkt_reference(x_emb, inputY_j, truth_j, params)
    np.testing.assert_allclose(np.asarray(total_loss), np.asarray(ref_loss), rtol=1e-4, atol=1e-4)
    np.testing.assert_allclose(np.asarray(preds), np.asarray(ref_preds), rtol=1e-4, atol=1e-4)

    print("KERNEL_OK")
</pallas_src>

<mosaic_0001>
module attributes {stable_mosaic.version = 11 : i64} {
  func.func @kernel(%arg0: memref<64x64xf32, #tpu.memory_space<vmem>>, %arg1: memref<64x16xf32, #tpu.memory_space<vmem>>, %arg2: memref<64x1xf32, #tpu.memory_space<vmem>>, %arg3: memref<1x32xf32, #tpu.memory_space<vmem>>, %arg4: memref<32x32xf32, #tpu.memory_space<vmem>>, %arg5: memref<1x32xf32, #tpu.memory_space<vmem>>, %arg6: memref<64x32xf32, #tpu.memory_space<vmem>>, %arg7: memref<1x32xf32, #tpu.memory_space<vmem>>, %arg8: memref<32x32xf32, #tpu.memory_space<vmem>>, %arg9: memref<1x32xf32, #tpu.memory_space<vmem>>, %arg10: memref<32x16xf32, #tpu.memory_space<vmem>>, %arg11: memref<1x16xf32, #tpu.memory_space<vmem>>, %arg12: memref<1x1xf32, #tpu.memory_space<vmem>>, %arg13: memref<64x1xf32, #tpu.memory_space<vmem>>, %arg14: memref<64x32xf32, #tpu.memory_space<vmem>>) attributes {dimension_semantics = [], scalar_prefetch = 0 : i64, scratch_operands = 1 : i64, tpu.core_type = #tpu.core_type<tc>} {
    %c0 = arith.constant 0 : index
    %c0_0 = arith.constant 0 : index
    %0 = vector.load %arg4[%c0, %c0_0] : memref<32x32xf32, #tpu.memory_space<vmem>>, vector<32x32xf32>
    %c0_1 = arith.constant 0 : index
    %c0_2 = arith.constant 0 : index
    %1 = vector.load %arg8[%c0_1, %c0_2] : memref<32x32xf32, #tpu.memory_space<vmem>>, vector<32x32xf32>
    %c0_3 = arith.constant 0 : index
    %c0_4 = arith.constant 0 : index
    %2 = vector.load %arg5[%c0_3, %c0_4] : memref<1x32xf32, #tpu.memory_space<vmem>>, vector<1x32xf32>
    %3 = vector.shape_cast %2 : vector<1x32xf32> to vector<1x32xf32>
    %4 = vector.broadcast %3 : vector<1x32xf32> to vector<8x32xf32>
    %c0_5 = arith.constant 0 : index
    %c0_6 = arith.constant 0 : index
    %5 = vector.load %arg9[%c0_5, %c0_6] : memref<1x32xf32, #tpu.memory_space<vmem>>, vector<1x32xf32>
    %6 = vector.shape_cast %5 : vector<1x32xf32> to vector<1x32xf32>
    %7 = vector.broadcast %6 : vector<1x32xf32> to vector<8x32xf32>
    %c0_7 = arith.constant 0 : index
    %c0_8 = arith.constant 0 : index
    %8 = vector.load %arg0[%c0_7, %c0_8] : memref<64x64xf32, #tpu.memory_space<vmem>>, vector<64x64xf32>
    %c0_9 = arith.constant 0 : index
    %c0_10 = arith.constant 0 : index
    %9 = vector.load %arg6[%c0_9, %c0_10] : memref<64x32xf32, #tpu.memory_space<vmem>>, vector<64x32xf32>
    %cst = arith.constant dense<0.000000e+00> : vector<64x32xf32>
    %10 = tpu.matmul %8, %9, %cst {dimension_numbers = #tpu.dot_dimension_numbers<[1], [0], [0], [1], [0, 0, 1, 1], [], []>} : vector<64x64xf32>, vector<64x32xf32>, vector<64x32xf32> -> vector<64x32xf32>
    %c0_11 = arith.constant 0 : index
    %c0_12 = arith.constant 0 : index
    %11 = vector.load %arg7[%c0_11, %c0_12] : memref<1x32xf32, #tpu.memory_space<vmem>>, vector<1x32xf32>
    %12 = vector.broadcast %11 : vector<1x32xf32> to vector<64x32xf32>
    %13 = arith.addf %10, %12 : vector<64x32xf32>
    %c0_13 = arith.constant 0 : index
    %c0_14 = arith.constant 0 : index
    %14 = vector.load %arg14[%c0_13, %c0_14] : memref<64x32xf32, #tpu.memory_space<vmem>>, vector<64x32xf32>
    tpu.vector_store %arg14[%c0_13, %c0_14], %13 {strides = array<i32>} : memref<64x32xf32, #tpu.memory_space<vmem>>, vector<64x32xf32>,
    %c0_15 = arith.constant 0 : index
    %c0_16 = arith.constant 0 : index
    %15 = vector.load %arg3[%c0_15, %c0_16] : memref<1x32xf32, #tpu.memory_space<vmem>>, vector<1x32xf32>
    %16 = vector.shape_cast %15 : vector<1x32xf32> to vector<1x32xf32>
    %17 = vector.broadcast %16 : vector<1x32xf32> to vector<8x32xf32>
    %c0_i32 = arith.constant 0 : i32
    %c8_i32 = arith.constant 8 : i32
    %18 = arith.muli %c0_i32, %c8_i32 : i32
    %19 = tpu.assume_multiple %18, 8 : i32
    %20 = arith.index_cast %19 : i32 to index
    %c0_17 = arith.constant 0 : index
    %21 = vector.load %arg14[%20, %c0_17] : memref<64x32xf32, #tpu.memory_space<vmem>>, vector<8x32xf32>
    %cst_18 = arith.constant dense<0.000000e+00> : vector<8x32xf32>
    %22 = tpu.matmul %17, %0, %cst_18 {dimension_numbers = #tpu.dot_dimension_numbers<[1], [0], [0], [1], [0, 0, 1, 1], [], []>} : vector<8x32xf32>, vector<32x32xf32>, vector<8x32xf32> -> vector<8x32xf32>
    %23 = arith.addf %22, %4 : vector<8x32xf32>
    %24 = arith.addf %23, %21 : vector<8x32xf32>
    %25 = math.tanh %24 : vector<8x32xf32>
    %cst_19 = arith.constant 0.000000e+00 : f32
    %26 = vector.broadcast %cst_19 : f32 to vector<8x32xf32>
    %27 = arith.maximumf %25, %26 : vector<8x32xf32>
    %cst_20 = arith.constant dense<0.000000e+00> : vector<8x32xf32>
    %28 = tpu.matmul %27, %1, %cst_20 {dimension_numbers = #tpu.dot_dimension_numbers<[1], [0], [0], [1], [0, 0, 1, 1], [], []>} : vector<8x32xf32>, vector<32x32xf32>, vector<8x32xf32> -> vector<8x32xf32>
    %29 = arith.addf %28, %7 : vector<8x32xf32>
    %cst_21 = arith.constant 0.000000e+00 : f32
    %30 = vector.broadcast %cst_21 : f32 to vector<8x32xf32>
    %31 = arith.maximumf %29, %30 : vector<8x32xf32>
    %32 = arith.index_cast %19 : i32 to index
    %c0_22 = arith.constant 0 : index
    %33 = vector.load %arg14[%32, %c0_22] : memref<64x32xf32, #tpu.memory_space<vmem>>, vector<8x32xf32>
    tpu.vector_store %arg14[%32, %c0_22], %31 {strides = array<i32>} : memref<64x32xf32, #tpu.memory_space<vmem>>, vector<8x32xf32>,
    %c1_i32 = arith.constant 1 : i32
    %c8_i32_23 = arith.constant 8 : i32
    %34 = arith.muli %c1_i32, %c8_i32_23 : i32
    %35 = tpu.assume_multiple %34, 8 : i32
    %36 = arith.index_cast %35 : i32 to index
    %c0_24 = arith.constant 0 : index
    %37 = vector.load %arg14[%36, %c0_24] : memref<64x32xf32, #tpu.memory_space<vmem>>, vector<8x32xf32>
    %cst_25 = arith.constant dense<0.000000e+00> : vector<8x32xf32>
    %38 = tpu.matmul %31, %0, %cst_25 {dimension_numbers = #tpu.dot_dimension_numbers<[1], [0], [0], [1], [0, 0, 1, 1], [], []>} : vector<8x32xf32>, vector<32x32xf32>, vector<8x32xf32> -> vector<8x32xf32>
    %39 = arith.addf %38, %4 : vector<8x32xf32>
    %40 = arith.addf %39, %37 : vector<8x32xf32>
    %41 = math.tanh %40 : vector<8x32xf32>
    %cst_26 = arith.constant 0.000000e+00 : f32
    %42 = vector.broadcast %cst_26 : f32 to vector<8x32xf32>
    %43 = arith.maximumf %41, %42 : vector<8x32xf32>
    %cst_27 = arith.constant dense<0.000000e+00> : vector<8x32xf32>
    %44 = tpu.matmul %43, %1, %cst_27 {dimension_numbers = #tpu.dot_dimension_numbers<[1], [0], [0], [1], [0, 0, 1, 1], [], []>} : vector<8x32xf32>, vector<32x32xf32>, vector<8x32xf32> -> vector<8x32xf32>
    %45 = arith.addf %44, %7 : vector<8x32xf32>
    %cst_28 = arith.constant 0.000000e+00 : f32
    %46 = vector.broadcast %cst_28 : f32 to vector<8x32xf32>
    %47 = arith.maximumf %45, %46 : vector<8x32xf32>
    %48 = arith.index_cast %35 : i32 to index
    %c0_29 = arith.constant 0 : index
    %49 = vector.load %arg14[%48, %c0_29] : memref<64x32xf32, #tpu.memory_space<vmem>>, vector<8x32xf32>
    tpu.vector_store %arg14[%48, %c0_29], %47 {strides = array<i32>} : memref<64x32xf32, #tpu.memory_space<vmem>>, vector<8x32xf32>,
    %c2_i32 = arith.constant 2 : i32
    %c8_i32_30 = arith.constant 8 : i32
    %50 = arith.muli %c2_i32, %c8_i32_30 : i32
    %51 = tpu.assume_multiple %50, 8 : i32
    %52 = arith.index_cast %51 : i32 to index
    %c0_31 = arith.constant 0 : index
    %53 = vector.load %arg14[%52, %c0_31] : memref<64x32xf32, #tpu.memory_space<vmem>>, vector<8x32xf32>
    %cst_32 = arith.constant dense<0.000000e+00> : vector<8x32xf32>
    %54 = tpu.matmul %47, %0, %cst_32 {dimension_numbers = #tpu.dot_dimension_numbers<[1], [0], [0], [1], [0, 0, 1, 1], [], []>} : vector<8x32xf32>, vector<32x32xf32>, vector<8x32xf32> -> vector<8x32xf32>
    %55 = arith.addf %54, %4 : vector<8x32xf32>
    %56 = arith.addf %55, %53 : vector<8x32xf32>
    %57 = math.tanh %56 : vector<8x32xf32>
    %cst_33 = arith.constant 0.000000e+00 : f32
    %58 = vector.broadcast %cst_33 : f32 to vector<8x32xf32>
    %59 = arith.maximumf %57, %58 : vector<8x32xf32>
    %cst_34 = arith.constant dense<0.000000e+00> : vector<8x32xf32>
    %60 = tpu.matmul %59, %1, %cst_34 {dimension_numbers = #tpu.dot_dimension_numbers<[1], [0], [0], [1], [0, 0, 1, 1], [], []>} : vector<8x32xf32>, vector<32x32xf32>, vector<8x32xf32> -> vector<8x32xf32>
    %61 = arith.addf %60, %7 : vector<8x32xf32>
    %cst_35 = arith.constant 0.000000e+00 : f32
    %62 = vector.broadcast %cst_35 : f32 to vector<8x32xf32>
    %63 = arith.maximumf %61, %62 : vector<8x32xf32>
    %64 = arith.index_cast %51 : i32 to index
    %c0_36 = arith.constant 0 : index
    %65 = vector.load %arg14[%64, %c0_36] : memref<64x32xf32, #tpu.memory_space<vmem>>, vector<8x32xf32>
    tpu.vector_store %arg14[%64, %c0_36], %63 {strides = array<i32>} : memref<64x32xf32, #tpu.memory_space<vmem>>, vector<8x32xf32>,
    %c3_i32 = arith.constant 3 : i32
    %c8_i32_37 = arith.constant 8 : i32
    %66 = arith.muli %c3_i32, %c8_i32_37 : i32
    %67 = tpu.assume_multiple %66, 8 : i32
    %68 = arith.index_cast %67 : i32 to index
    %c0_38 = arith.constant 0 : index
    %69 = vector.load %arg14[%68, %c0_38] : memref<64x32xf32, #tpu.memory_space<vmem>>, vector<8x32xf32>
    %cst_39 = arith.constant dense<0.000000e+00> : vector<8x32xf32>
    %70 = tpu.matmul %63, %0, %cst_39 {dimension_numbers = #tpu.dot_dimension_numbers<[1], [0], [0], [1], [0, 0, 1, 1], [], []>} : vector<8x32xf32>, vector<32x32xf32>, vector<8x32xf32> -> vector<8x32xf32>
    %71 = arith.addf %70, %4 : vector<8x32xf32>
    %72 = arith.addf %71, %69 : vector<8x32xf32>
    %73 = math.tanh %72 : vector<8x32xf32>
    %cst_40 = arith.constant 0.000000e+00 : f32
    %74 = vector.broadcast %cst_40 : f32 to vector<8x32xf32>
    %75 = arith.maximumf %73, %74 : vector<8x32xf32>
    %cst_41 = arith.constant dense<0.000000e+00> : vector<8x32xf32>
    %76 = tpu.matmul %75, %1, %cst_41 {dimension_numbers = #tpu.dot_dimension_numbers<[1], [0], [0], [1], [0, 0, 1, 1], [], []>} : vector<8x32xf32>, vector<32x32xf32>, vector<8x32xf32> -> vector<8x32xf32>
    %77 = arith.addf %76, %7 : vector<8x32xf32>
    %cst_42 = arith.constant 0.000000e+00 : f32
    %78 = vector.broadcast %cst_42 : f32 to vector<8x32xf32>
    %79 = arith.maximumf %77, %78 : vector<8x32xf32>
    %80 = arith.index_cast %67 : i32 to index
    %c0_43 = arith.constant 0 : index
    %81 = vector.load %arg14[%80, %c0_43] : memref<64x32xf32, #tpu.memory_space<vmem>>, vector<8x32xf32>
    tpu.vector_store %arg14[%80, %c0_43], %79 {strides = array<i32>} : memref<64x32xf32, #tpu.memory_space<vmem>>, vector<8x32xf32>,
    %c4_i32 = arith.constant 4 : i32
    %c8_i32_44 = arith.constant 8 : i32
    %82 = arith.muli %c4_i32, %c8_i32_44 : i32
    %83 = tpu.assume_multiple %82, 8 : i32
    %84 = arith.index_cast %83 : i32 to index
    %c0_45 = arith.constant 0 : index
    %85 = vector.load %arg14[%84, %c0_45] : memref<64x32xf32, #tpu.memory_space<vmem>>, vector<8x32xf32>
    %cst_46 = arith.constant dense<0.000000e+00> : vector<8x32xf32>
    %86 = tpu.matmul %79, %0, %cst_46 {dimension_numbers = #tpu.dot_dimension_numbers<[1], [0], [0], [1], [0, 0, 1, 1], [], []>} : vector<8x32xf32>, vector<32x32xf32>, vector<8x32xf32> -> vector<8x32xf32>
    %87 = arith.addf %86, %4 : vector<8x32xf32>
    %88 = arith.addf %87, %85 : vector<8x32xf32>
    %89 = math.tanh %88 : vector<8x32xf32>
    %cst_47 = arith.constant 0.000000e+00 : f32
    %90 = vector.broadcast %cst_47 : f32 to vector<8x32xf32>
    %91 = arith.maximumf %89, %90 : vector<8x32xf32>
    %cst_48 = arith.constant dense<0.000000e+00> : vector<8x32xf32>
    %92 = tpu.matmul %91, %1, %cst_48 {dimension_numbers = #tpu.dot_dimension_numbers<[1], [0], [0], [1], [0, 0, 1, 1], [], []>} : vector<8x32xf32>, vector<32x32xf32>, vector<8x32xf32> -> vector<8x32xf32>
    %93 = arith.addf %92, %7 : vector<8x32xf32>
    %cst_49 = arith.constant 0.000000e+00 : f32
    %94 = vector.broadcast %cst_49 : f32 to vector<8x32xf32>
    %95 = arith.maximumf %93, %94 : vector<8x32xf32>
    %96 = arith.index_cast %83 : i32 to index
    %c0_50 = arith.constant 0 : index
    %97 = vector.load %arg14[%96, %c0_50] : memref<64x32xf32, #tpu.memory_space<vmem>>, vector<8x32xf32>
    tpu.vector_store %arg14[%96, %c0_50], %95 {strides = array<i32>} : memref<64x32xf32, #tpu.memory_space<vmem>>, vector<8x32xf32>,
    %c5_i32 = arith.constant 5 : i32
    %c8_i32_51 = arith.constant 8 : i32
    %98 = arith.muli %c5_i32, %c8_i32_51 : i32
    %99 = tpu.assume_multiple %98, 8 : i32
    %100 = arith.index_cast %99 : i32 to index
    %c0_52 = arith.constant 0 : index
    %101 = vector.load %arg14[%100, %c0_52] : memref<64x32xf32, #tpu.memory_space<vmem>>, vector<8x32xf32>
    %cst_53 = arith.constant dense<0.000000e+00> : vector<8x32xf32>
    %102 = tpu.matmul %95, %0, %cst_53 {dimension_numbers = #tpu.dot_dimension_numbers<[1], [0], [0], [1], [0, 0, 1, 1], [], []>} : vector<8x32xf32>, vector<32x32xf32>, vector<8x32xf32> -> vector<8x32xf32>
    %103 = arith.addf %102, %4 : vector<8x32xf32>
    %104 = arith.addf %103, %101 : vector<8x32xf32>
    %105 = math.tanh %104 : vector<8x32xf32>
    %cst_54 = arith.constant 0.000000e+00 : f32
    %106 = vector.broadcast %cst_54 : f32 to vector<8x32xf32>
    %107 = arith.maximumf %105, %106 : vector<8x32xf32>
    %cst_55 = arith.constant dense<0.000000e+00> : vector<8x32xf32>
    %108 = tpu.matmul %107, %1, %cst_55 {dimension_numbers = #tpu.dot_dimension_numbers<[1], [0], [0], [1], [0, 0, 1, 1], [], []>} : vector<8x32xf32>, vector<32x32xf32>, vector<8x32xf32> -> vector<8x32xf32>
    %109 = arith.addf %108, %7 : vector<8x32xf32>
    %cst_56 = arith.constant 0.000000e+00 : f32
    %110 = vector.broadcast %cst_56 : f32 to vector<8x32xf32>
    %111 = arith.maximumf %109, %110 : vector<8x32xf32>
    %112 = arith.index_cast %99 : i32 to index
    %c0_57 = arith.constant 0 : index
    %113 = vector.load %arg14[%112, %c0_57] : memref<64x32xf32, #tpu.memory_space<vmem>>, vector<8x32xf32>
    tpu.vector_store %arg14[%112, %c0_57], %111 {strides = array<i32>} : memref<64x32xf32, #tpu.memory_space<vmem>>, vector<8x32xf32>,
    %c6_i32 = arith.constant 6 : i32
    %c8_i32_58 = arith.constant 8 : i32
    %114 = arith.muli %c6_i32, %c8_i32_58 : i32
    %115 = tpu.assume_multiple %114, 8 : i32
    %116 = arith.index_cast %115 : i32 to index
    %c0_59 = arith.constant 0 : index
    %117 = vector.load %arg14[%116, %c0_59] : memref<64x32xf32, #tpu.memory_space<vmem>>, vector<8x32xf32>
    %cst_60 = arith.constant dense<0.000000e+00> : vector<8x32xf32>
    %118 = tpu.matmul %111, %0, %cst_60 {dimension_numbers = #tpu.dot_dimension_numbers<[1], [0], [0], [1], [0, 0, 1, 1], [], []>} : vector<8x32xf32>, vector<32x32xf32>, vector<8x32xf32> -> vector<8x32xf32>
    %119 = arith.addf %118, %4 : vector<8x32xf32>
    %120 = arith.addf %119, %117 : vector<8x32xf32>
    %121 = math.tanh %120 : vector<8x32xf32>
    %cst_61 = arith.constant 0.000000e+00 : f32
    %122 = vector.broadcast %cst_61 : f32 to vector<8x32xf32>
    %123 = arith.maximumf %121, %122 : vector<8x32xf32>
    %cst_62 = arith.constant dense<0.000000e+00> : vector<8x32xf32>
    %124 = tpu.matmul %123, %1, %cst_62 {dimension_numbers = #tpu.dot_dimension_numbers<[1], [0], [0], [1], [0, 0, 1, 1], [], []>} : vector<8x32xf32>, vector<32x32xf32>, vector<8x32xf32> -> vector<8x32xf32>
    %125 = arith.addf %124, %7 : vector<8x32xf32>
    %cst_63 = arith.constant 0.000000e+00 : f32
    %126 = vector.broadcast %cst_63 : f32 to vector<8x32xf32>
    %127 = arith.maximumf %125, %126 : vector<8x32xf32>
    %128 = arith.index_cast %115 : i32 to index
    %c0_64 = arith.constant 0 : index
    %129 = vector.load %arg14[%128, %c0_64] : memref<64x32xf32, #tpu.memory_space<vmem>>, vector<8x32xf32>
    tpu.vector_store %arg14[%128, %c0_64], %127 {strides = array<i32>} : memref<64x32xf32, #tpu.memory_space<vmem>>, vector<8x32xf32>,
    %c7_i32 = arith.constant 7 : i32
    %c8_i32_65 = arith.constant 8 : i32
    %130 = arith.muli %c7_i32, %c8_i32_65 : i32
    %131 = tpu.assume_multiple %130, 8 : i32
    %132 = arith.index_cast %131 : i32 to index
    %c0_66 = arith.constant 0 : index
    %133 = vector.load %arg14[%132, %c0_66] : memref<64x32xf32, #tpu.memory_space<vmem>>, vector<8x32xf32>
    %cst_67 = arith.constant dense<0.000000e+00> : vector<8x32xf32>
    %134 = tpu.matmul %127, %0, %cst_67 {dimension_numbers = #tpu.dot_dimension_numbers<[1], [0], [0], [1], [0, 0, 1, 1], [], []>} : vector<8x32xf32>, vector<32x32xf32>, vector<8x32xf32> -> vector<8x32xf32>
    %135 = arith.addf %134, %4 : vector<8x32xf32>
    %136 = arith.addf %135, %133 : vector<8x32xf32>
    %137 = math.tanh %136 : vector<8x32xf32>
    %cst_68 = arith.constant 0.000000e+00 : f32
    %138 = vector.broadcast %cst_68 : f32 to vector<8x32xf32>
    %139 = arith.maximumf %137, %138 : vector<8x32xf32>
    %cst_69 = arith.constant dense<0.000000e+00> : vector<8x32xf32>
    %140 = tpu.matmul %139, %1, %cst_69 {dimension_numbers = #tpu.dot_dimension_numbers<[1], [0], [0], [1], [0, 0, 1, 1], [], []>} : vector<8x32xf32>, vector<32x32xf32>, vector<8x32xf32> -> vector<8x32xf32>
    %141 = arith.addf %140, %7 : vector<8x32xf32>
    %cst_70 = arith.constant 0.000000e+00 : f32
    %142 = vector.broadcast %cst_70 : f32 to vector<8x32xf32>
    %143 = arith.maximumf %141, %142 : vector<8x32xf32>
    %144 = arith.index_cast %131 : i32 to index
    %c0_71 = arith.constant 0 : index
    %145 = vector.load %arg14[%144, %c0_71] : memref<64x32xf32, #tpu.memory_space<vmem>>, vector<8x32xf32>
    tpu.vector_store %arg14[%144, %c0_71], %143 {strides = array<i32>} : memref<64x32xf32, #tpu.memory_space<vmem>>, vector<8x32xf32>,
    %c8_i32_72 = arith.constant 8 : i32
    %c0_73 = arith.constant 0 : index
    %c0_74 = arith.constant 0 : index
    %146 = vector.load %arg14[%c0_73, %c0_74] : memref<64x32xf32, #tpu.memory_space<vmem>>, vector<64x32xf32>
    %c0_75 = arith.constant 0 : index
    %c0_76 = arith.constant 0 : index
    %147 = vector.load %arg10[%c0_75, %c0_76] : memref<32x16xf32, #tpu.memory_space<vmem>>, vector<32x16xf32>
    %cst_77 = arith.constant dense<0.000000e+00> : vector<64x16xf32>
    %148 = tpu.matmul %146, %147, %cst_77 {dimension_numbers = #tpu.dot_dimension_numbers<[1], [0], [0], [1], [0, 0, 1, 1], [], []>} : vector<64x32xf32>, vector<32x16xf32>, vector<64x16xf32> -> vector<64x16xf32>
    %c0_78 = arith.constant 0 : index
    %c0_79 = arith.constant 0 : index
    %149 = vector.load %arg11[%c0_78, %c0_79] : memref<1x16xf32, #tpu.memory_space<vmem>>, vector<1x16xf32>
    %150 = vector.broadcast %149 : vector<1x16xf32> to vector<64x16xf32>
    %151 = arith.addf %148, %150 : vector<64x16xf32>
    %152 = arith.negf %151 : vector<64x16xf32>
    %153 = math.exp %152 : vector<64x16xf32>
    %cst_80 = arith.constant 1.000000e+00 : f32
    %154 = vector.broadcast %cst_80 : f32 to vector<64x16xf32>
    %155 = arith.addf %154, %153 : vector<64x16xf32>
    %156 = arith.divf %154, %155 : vector<64x16xf32>
    %c0_81 = arith.constant 0 : index
    %c0_82 = arith.constant 0 : index
    %157 = vector.load %arg1[%c0_81, %c0_82] : memref<64x16xf32, #tpu.memory_space<vmem>>, vector<64x16xf32>
    %158 = arith.mulf %156, %157 : vector<64x16xf32>
    %cst_83 = arith.constant dense<0.000000e+00> : vector<64xf32>
    %159 = vector.multi_reduction <add>, %158, %cst_83 [1] : vector<64x16xf32> to vector<64xf32>
    %160 = vector.shape_cast %159 : vector<64xf32> to vector<64x1xf32>
    %c0_84 = arith.constant 0 : index
    %c0_85 = arith.constant 0 : index
    %161 = vector.load %arg2[%c0_84, %c0_85] : memref<64x1xf32, #tpu.memory_space<vmem>>, vector<64x1xf32>
    %162 = math.log %160 : vector<64x1xf32>
    %cst_86 = arith.constant -1.000000e+02 : f32
    %163 = vector.broadcast %cst_86 : f32 to vector<64x1xf32>
    %164 = arith.maximumf %162, %163 : vector<64x1xf32>
    %cst_87 = arith.constant 1.000000e+00 : f32
    %165 = vector.broadcast %cst_87 : f32 to vector<64x1xf32>
    %166 = arith.subf %165, %160 : vector<64x1xf32>
    %167 = math.log %166 : vector<64x1xf32>
    %cst_88 = arith.constant -1.000000e+02 : f32
    %168 = vector.broadcast %cst_88 : f32 to vector<64x1xf32>
    %169 = arith.maximumf %167, %168 : vector<64x1xf32>
    %170 = arith.mulf %161, %164 : vector<64x1xf32>
    %cst_89 = arith.constant 1.000000e+00 : f32
    %171 = vector.broadcast %cst_89 : f32 to vector<64x1xf32>
    %172 = arith.subf %171, %161 : vector<64x1xf32>
    %173 = arith.mulf %172, %169 : vector<64x1xf32>
    %174 = arith.addf %170, %173 : vector<64x1xf32>
    %cst_90 = arith.constant 0.000000e+00 : f32
    %175 = vector.broadcast %cst_90 : f32 to vector<64x1xf32>
    %176 = arith.subf %175, %174 : vector<64x1xf32>
    %c0_91 = arith.constant 0 : index
    %c0_92 = arith.constant 0 : index
    %177 = vector.load %arg13[%c0_91, %c0_92] : memref<64x1xf32, #tpu.memory_space<vmem>>, vector<64x1xf32>
    tpu.vector_store %arg13[%c0_91, %c0_92], %160 {strides = array<i32>} : memref<64x1xf32, #tpu.memory_space<vmem>>, vector<64x1xf32>,
    %178 = vector.shape_cast %176 : vector<64x1xf32> to vector<1x64x1xf32>
    %cst_93 = arith.constant dense<0.000000e+00> : vector<1xf32>
    %179 = vector.multi_reduction <add>, %178, %cst_93 [1, 2] : vector<1x64x1xf32> to vector<1xf32>
    %180 = vector.shape_cast %179 : vector<1xf32> to vector<1x1x1xf32>
    %181 = vector.extract %180[0, 0, 0] : f32 from vector<1x1x1xf32>
    %182 = vector.broadcast %181 : f32 to vector<1x1xf32>
    %c0_94 = arith.constant 0 : index
    %c0_95 = arith.constant 0 : index
    %183 = vector.load %arg12[%c0_94, %c0_95] : memref<1x1xf32, #tpu.memory_space<vmem>>, vector<1x1xf32>
    tpu.vector_store %arg12[%c0_94, %c0_95], %182 {strides = array<i32>} : memref<1x1xf32, #tpu.memory_space<vmem>>, vector<1x1xf32>,
    return
  }
}

</mosaic_0001>

<llo_original>
// kernel: tpu_custom_call.1
$region0: #{tpu_custom_call.1}
  #allocation0 [shape = 'u32[]', space=smem, size = 0x4, offset = 0x4, fixed_abs, tag = 'smem constant byte address 0x4 - core index']
  #allocation1 [shape = 'u32[144,128]{1,0:T(1,128)}', space=vmem, size = 0x12000, scoped, tag = 'internal scratch']
  #allocation2 [shape = 'f32[64,32]{1,0:T(8,128)}', space=vmem, size = 0x8000, scoped, tag = 'scratch operand']
  %s0 = inlined_call_operand.vmem [shape: f32[64,64], index: 0, kind: input, shape index: {}]
  %s1 = inlined_call_operand.vmem [shape: f32[64,16], index: 1, kind: input, shape index: {}]
  %s2 = inlined_call_operand.vmem [shape: f32[64,1], index: 2, kind: input, shape index: {}]
  %s3 = inlined_call_operand.vmem [shape: f32[1,32], index: 3, kind: input, shape index: {}]
  %s4 = inlined_call_operand.vmem [shape: f32[32,32], index: 4, kind: input, shape index: {}]
  %s5 = inlined_call_operand.vmem [shape: f32[1,32], index: 5, kind: input, shape index: {}]
  %s6 = inlined_call_operand.vmem [shape: f32[64,32], index: 6, kind: input, shape index: {}]
  %s7 = inlined_call_operand.vmem [shape: f32[1,32], index: 7, kind: input, shape index: {}]
  %s8 = inlined_call_operand.vmem [shape: f32[32,32], index: 8, kind: input, shape index: {}]
  %s9 = inlined_call_operand.vmem [shape: f32[1,32], index: 9, kind: input, shape index: {}]
  %s10 = inlined_call_operand.vmem [shape: f32[32,16], index: 10, kind: input, shape index: {}]
  %s11 = inlined_call_operand.vmem [shape: f32[1,16], index: 11, kind: input, shape index: {}]
  %s12 = inlined_call_operand.hbm [shape: f32[1,1], index: 12, kind: output, shape index: {0}]
  %s13 = inlined_call_operand.vmem [shape: f32[64,1], index: 13, kind: output, shape index: {1}]
  %14 = xla_tuple %s12, %s13
  %s15 = sld [smem:[#allocation0]]
  $region66: #{tpu_custom_call.1} parent=0
    _
  %s17 = ssub.s32 1, %s15
  %s18 = scalar_select 0, %s17, %s15
  $region1: #{tpu_custom_call.1} parent=0
    #allocation3 [shape = 'u8[512]{0}', space=vmem, size = 0x400, scoped, tag = 'output window, operand 0, single buffered']
    #allocation4 [shape = 's32[1]{0}', space=sflag, size = 0x4, scoped, tag = 'scoped memory for tpu_custom_call.1']
    %19 = vsyncpa [#allocation4], 0
    // Predicated region
    $region2: #{tpu_custom_call.1} parent=1 // pred_check
      _
    $region3: #{tpu_custom_call.1} parent=1 // pred_check_branch
      %21 = sbr.rel (0) target = $region5
    $region4: #{tpu_custom_call.1} parent=1 // pred_region
      _
    $region5: #{tpu_custom_call.1} parent=1 // pred_fallthru
      _
    // Predicated region
    $region6: #{tpu_custom_call.1} parent=1 // pred_check
      _
    $region7: #{tpu_custom_call.1} parent=1 // pred_check_branch
      %23 = sbr.rel (0) target = $region9
    $region8: #{tpu_custom_call.1} parent=1 // pred_region
      _
    $region9: #{tpu_custom_call.1} parent=1 // pred_fallthru
      _
    // Predicated region
    $region10: #{tpu_custom_call.1} parent=1 // pred_check
      _
    $region11: #{tpu_custom_call.1} parent=1 // pred_check_branch
      %25 = sbr.rel (0) target = $region13
    $region12: #{tpu_custom_call.1} parent=1 // pred_region
      _
    $region13: #{tpu_custom_call.1} parent=1 // pred_fallthru
      _
    // Predicated region
    $region14: #{tpu_custom_call.1} parent=1 // pred_check
      _
    $region15: #{tpu_custom_call.1} parent=1 // pred_check_branch
      %27 = sbr.rel (0) target = $region17
    $region16: #{tpu_custom_call.1} parent=1 // pred_region
      _
    $region17: #{tpu_custom_call.1} parent=1 // pred_fallthru
      _
    // Predicated region
    $region18: #{tpu_custom_call.1} parent=1 // pred_check
      _
    $region19: #{tpu_custom_call.1} parent=1 // pred_check_branch
      %29 = sbr.rel (0) target = $region21
    $region20: #{tpu_custom_call.1} parent=1 // pred_region
      _
    $region21: #{tpu_custom_call.1} parent=1 // pred_fallthru
      _
    // Predicated region
    $region22: #{tpu_custom_call.1} parent=1 // pred_check
      _
    $region23: #{tpu_custom_call.1} parent=1 // pred_check_branch
      %31 = sbr.rel (0) target = $region25
    $region24: #{tpu_custom_call.1} parent=1 // pred_region
      _
    $region25: #{tpu_custom_call.1} parent=1 // pred_fallthru
      _
    // Predicated region
    $region26: #{tpu_custom_call.1} parent=1 // pred_check
      _
    $region27: #{tpu_custom_call.1} parent=1 // pred_check_branch
      %33 = sbr.rel (0) target = $region29
    $region28: #{tpu_custom_call.1} parent=1 // pred_region
      _
    $region29: #{tpu_custom_call.1} parent=1 // pred_fallthru
      _
    // Predicated region
    $region30: #{tpu_custom_call.1} parent=1 // pred_check
      _
    $region31: #{tpu_custom_call.1} parent=1 // pred_check_branch
      %35 = sbr.rel (0) target = $region33
    $region32: #{tpu_custom_call.1} parent=1 // pred_region
      _
    $region33: #{tpu_custom_call.1} parent=1 // pred_fallthru
      _
    // Predicated region
    $region34: #{tpu_custom_call.1} parent=1 // pred_check
      _
    $region35: #{tpu_custom_call.1} parent=1 // pred_check_branch
      %37 = sbr.rel (0) target = $region37
    $region36: #{tpu_custom_call.1} parent=1 // pred_region
      _
    $region37: #{tpu_custom_call.1} parent=1 // pred_fallthru
      _
    // Predicated region
    $region38: #{tpu_custom_call.1} parent=1 // pred_check
      _
    $region39: #{tpu_custom_call.1} parent=1 // pred_check_branch
      %39 = sbr.rel (0) target = $region41
    $region40: #{tpu_custom_call.1} parent=1 // pred_region
      _
    $region41: #{tpu_custom_call.1} parent=1 // pred_fallthru
      _
    // Predicated region
    $region42: #{tpu_custom_call.1} parent=1 // pred_check
      _
    $region43: #{tpu_custom_call.1} parent=1 // pred_check_branch
      %41 = sbr.rel (0) target = $region45
    $region44: #{tpu_custom_call.1} parent=1 // pred_region
      _
    $region45: #{tpu_custom_call.1} parent=1 // pred_fallthru
      _
    // Predicated region
    $region46: #{tpu_custom_call.1} parent=1 // pred_check
      _
    $region47: #{tpu_custom_call.1} parent=1 // pred_check_branch
      %43 = sbr.rel (0) target = $region49
    $region48: #{tpu_custom_call.1} parent=1 // pred_region
      _
    $region49: #{tpu_custom_call.1} parent=1 // pred_fallthru
      _
    %v44 = vld [vmem:[%s4] sm:$0xff]
    %v45 = vld [vmem:[%s4 + $0x8] sm:$0xff]
    %v46 = vld [vmem:[%s4 + $0x10] sm:$0xff]
    %v47 = vld [vmem:[%s4 + $0x18] sm:$0xff]
    %v48 = vld [vmem:[%s8] sm:$0xff]
    %v49 = vld [vmem:[%s8 + $0x8] sm:$0xff]
    %v50 = vld [vmem:[%s8 + $0x10] sm:$0xff]
    %v51 = vld [vmem:[%s8 + $0x18] sm:$0xff]
    %v52 = vld [vmem:[%s5] sm:$0x1]
    %v54 = vlaneseq
    %v55 = vshrl.u32 %v54, 7
    %v56 = vsub.s32 0, %v55
    %v57 = vrot.slane %v52, %v56
    %v59 = vld [vmem:[%s9] sm:$0x1]
    %v61 = vlaneseq
    %v62 = vshrl.u32 %v61, 7
    %v63 = vsub.s32 0, %v62
    %v64 = vrot.slane %v59, %v63
    %v66 = vld [vmem:[%s0] sm:$0xff]
    %v67 = vld [vmem:[%s0 + $0x8] sm:$0xff]
    %v68 = vld [vmem:[%s0 + $0x10] sm:$0xff]
    %v69 = vld [vmem:[%s0 + $0x18] sm:$0xff]
    %v70 = vld [vmem:[%s0 + $0x20] sm:$0xff]
    %v71 = vld [vmem:[%s0 + $0x28] sm:$0xff]
    %v72 = vld [vmem:[%s0 + $0x30] sm:$0xff]
    %v73 = vld [vmem:[%s0 + $0x38] sm:$0xff]
    %v74 = vld [vmem:[%s6] sm:$0xff]
    %v75 = vld [vmem:[%s6 + $0x8] sm:$0xff]
    %v76 = vld [vmem:[%s6 + $0x10] sm:$0xff]
    %v77 = vld [vmem:[%s6 + $0x18] sm:$0xff]
    %v78 = vld [vmem:[%s6 + $0x20] sm:$0xff]
    %v79 = vld [vmem:[%s6 + $0x28] sm:$0xff]
    %v80 = vld [vmem:[%s6 + $0x30] sm:$0xff]
    %v81 = vld [vmem:[%s6 + $0x38] sm:$0xff]
    %v82 = vld [vmem:[%s7] sm:$0x1]
    %v84 = vlaneseq
    %v85 = vshrl.u32 %v84, 7
    %v86 = vsub.s32 0, %v85
    %v87 = vrot.slane %v82, %v86
    %vm89 = vcmask 523264
    %v91 = vsel %vm89, %v66, 0
    %v94 = vsel %vm89, %v67, 0
    %v97 = vsel %vm89, %v68, 0
    %v100 = vsel %vm89, %v69, 0
    %v103 = vsel %vm89, %v70, 0
    %v106 = vsel %vm89, %v71, 0
    %v109 = vsel %vm89, %v72, 0
    %v112 = vsel %vm89, %v73, 0
    %114 = vmatprep.subr.mxu0 0.0
    %115 = vmatpush1.msra.mxu0 0.0
    %116 = vmatprep.subr.mxu0 0.0
    %117 = vmatpush1.msra.mxu0 0.0
    %118 = vmatprep.subr.mxu0 0.0
    %119 = vmatpush1.msra.mxu0 0.0
    %120 = vmatprep.subr.mxu0 0.0
    %121 = vmatpush1.msra.mxu0 0.0
    %122 = vmatprep.subr.mxu0 0.0
    %123 = vmatpush1.msra.mxu0 0.0
    %124 = vmatprep.subr.mxu0 0.0
    %125 = vmatpush1.msra.mxu0 0.0
    %126 = vmatprep.subr.mxu0 0.0
    %127 = vmatpush1.msra.mxu0 0.0
    %128 = vmatprep.subr.mxu0 0.0
    %129 = vmatpush1.msra.mxu0 0.0
    %130 = vmatprep.subr.mxu0 0.0
    %131 = vmatpush1.msra.mxu0 %v81
    %132 = vmatprep.subr.mxu0 0.0
    %133 = vmatpush1.msra.mxu0 %v80
    %134 = vmatprep.subr.mxu0 0.0
    %135 = vmatpush1.msra.mxu0 %v79
    %136 = vmatprep.subr.mxu0 0.0
    %137 = vmatpush1.msra.mxu0 %v78
    %138 = vmatprep.subr.mxu0 0.0
    %139 = vmatpush1.msra.mxu0 %v77
    %140 = vmatprep.subr.mxu0 0.0
    %141 = vmatpush1.msra.mxu0 %v76
    %142 = vmatprep.subr.mxu0 0.0
    %143 = vmatpush1.msra.mxu0 %v75
    %144 = vmatprep.subr.mxu0 0.0
    %145 = vmatpush1.msra.mxu0 %v74
    %146 = vmatprep.subr.mxu0 0.0
    %147 = vmatpush2.msra.mxu0 0.0
    %148 = vmatprep.subr.mxu0 0.0
    %149 = vmatpush2.msra.mxu0 0.0
    %150 = vmatprep.subr.mxu0 0.0
    %151 = vmatpush2.msra.mxu0 0.0
    %152 = vmatprep.subr.mxu0 0.0
    %153 = vmatpush2.msra.mxu0 0.0
    %154 = vmatprep.subr.mxu0 0.0
    %155 = vmatpush2.msra.mxu0 0.0
    %156 = vmatprep.subr.mxu0 0.0
    %157 = vmatpush2.msra.mxu0 0.0
    %158 = vmatprep.subr.mxu0 0.0
    %159 = vmatpush2.msra.mxu0 0.0
    %160 = vmatprep.subr.mxu0 0.0
    %161 = vmatpush2.msra.mxu0 0.0
    %162 = vmatprep.subr.mxu0 0.0
    %163 = vmatpush2.msra.mxu0 0.0
    %164 = vmatprep.subr.mxu0 0.0
    %165 = vmatpush2.msra.mxu0 0.0
    %166 = vmatprep.subr.mxu0 0.0
    %167 = vmatpush2.msra.mxu0 0.0
    %168 = vmatprep.subr.mxu0 0.0
    %169 = vmatpush2.msra.mxu0 0.0
    %170 = vmatprep.subr.mxu0 0.0
    %171 = vmatpush2.msra.mxu0 0.0
    %172 = vmatprep.subr.mxu0 0.0
    %173 = vmatpush2.msra.mxu0 0.0
    %174 = vmatprep.subr.mxu0 0.0
    %175 = vmatpush2.msra.mxu0 0.0
    %176 = vmatprep.subr.mxu0 0.0
    %177 = vmatpush2.msra.mxu0 0.0
    %178 = vmatprep.mubr.f32.mxu0 0.0
    %179 = vmatmul.mubr.f32.gmra.mxu0 %v91
    %v180 = vpop.f32.mrf.mxu0
    %v181 = vadd.f32 %v87, %v180
    %v182 = vpop.f32.mrf.mxu0
    %183 = vmatprep.mubr.f32.mxu0 0.0
    %184 = vmatmul.mubr.f32.gmra.mxu0 %v94
    %v185 = vpop.f32.mrf.mxu0
    %v186 = vadd.f32 %v87, %v185
    %v187 = vpop.f32.mrf.mxu0
    %188 = vmatprep.mubr.f32.mxu0 0.0
    %189 = vmatmul.mubr.f32.gmra.mxu0 %v97
    %v190 = vpop.f32.mrf.mxu0
    %v191 = vadd.f32 %v87, %v190
    %v192 = vpop.f32.mrf.mxu0
    %193 = vmatprep.mubr.f32.mxu0 0.0
    %194 = vmatmul.mubr.f32.gmra.mxu0 %v100
    %v195 = vpop.f32.mrf.mxu0
    %v196 = vadd.f32 %v87, %v195
    %v197 = vpop.f32.mrf.mxu0
    %198 = vmatprep.mubr.f32.mxu0 0.0
    %199 = vmatmul.mubr.f32.gmra.mxu0 %v103
    %v200 = vpop.f32.mrf.mxu0
    %v201 = vadd.f32 %v87, %v200
    %v202 = vpop.f32.mrf.mxu0
    %203 = vmatprep.mubr.f32.mxu0 0.0
    %204 = vmatmul.mubr.f32.gmra.mxu0 %v106
    %v205 = vpop.f32.mrf.mxu0
    %v206 = vadd.f32 %v87, %v205
    %v207 = vpop.f32.mrf.mxu0
    %208 = vmatprep.mubr.f32.mxu0 0.0
    %209 = vmatmul.mubr.f32.gmra.mxu0 %v109
    %v210 = vpop.f32.mrf.mxu0
    %v211 = vadd.f32 %v87, %v210
    %v212 = vpop.f32.mrf.mxu0
    %213 = vmatprep.mubr.f32.mxu0 0.0
    %214 = vmatmul.mubr.f32.gmra.mxu0 %v112
    %v215 = vpop.f32.mrf.mxu0
    %v216 = vadd.f32 %v87, %v215
    %v217 = vpop.f32.mrf.mxu0
    %218 = vdwg.mxu0
    %vm219 = vcmask 261120
    %220 = vst.msk [vmem:[#allocation2] sm:$0xff] %vm219, %v181
    %221 = vst.msk [vmem:[#allocation2 + $0x8] sm:$0xff] %vm219, %v186
    %222 = vst.msk [vmem:[#allocation2 + $0x10] sm:$0xff] %vm219, %v191
    %223 = vst.msk [vmem:[#allocation2 + $0x18] sm:$0xff] %vm219, %v196
    %224 = vst.msk [vmem:[#allocation2 + $0x20] sm:$0xff] %vm219, %v201
    %225 = vst.msk [vmem:[#allocation2 + $0x28] sm:$0xff] %vm219, %v206
    %226 = vst.msk [vmem:[#allocation2 + $0x30] sm:$0xff] %vm219, %v211
    %227 = vst.msk [vmem:[#allocation2 + $0x38] sm:$0xff] %vm219, %v216
    %v228 = vld [vmem:[%s3] sm:$0x1]
    %v230 = vlaneseq
    %v231 = vshrl.u32 %v230, 7
    %v232 = vsub.s32 0, %v231
    %v233 = vrot.slane %v228, %v232
    %v234 = vld [vmem:[#allocation2] sm:$0xff]
    %v235 = vsel %vm219, %v233, 0
    %237 = vmatprep.subr.mxu0 0.0
    %238 = vmatpush1.msra.mxu0 0.0
    %239 = vmatprep.subr.mxu0 0.0
    %240 = vmatpush1.msra.mxu0 0.0
    %241 = vmatprep.subr.mxu0 0.0
    %242 = vmatpush1.msra.mxu0 0.0
    %243 = vmatprep.subr.mxu0 0.0
    %244 = vmatpush1.msra.mxu0 0.0
    %245 = vmatprep.subr.mxu0 0.0
    %246 = vmatpush1.msra.mxu0 0.0
    %247 = vmatprep.subr.mxu0 0.0
    %248 = vmatpush1.msra.mxu0 0.0
    %249 = vmatprep.subr.mxu0 0.0
    %250 = vmatpush1.msra.mxu0 0.0
    %251 = vmatprep.subr.mxu0 0.0
    %252 = vmatpush1.msra.mxu0 0.0
    %253 = vmatprep.subr.mxu0 0.0
    %254 = vmatpush1.msra.mxu0 0.0
    %255 = vmatprep.subr.mxu0 0.0
    %256 = vmatpush1.msra.mxu0 0.0
    %257 = vmatprep.subr.mxu0 0.0
    %258 = vmatpush1.msra.mxu0 0.0
    %259 = vmatprep.subr.mxu0 0.0
    %260 = vmatpush1.msra.mxu0 0.0
    %261 = vmatprep.subr.mxu0 0.0
    %262 = vmatpush1.msra.mxu0 %v47
    %263 = vmatprep.subr.mxu0 0.0
    %264 = vmatpush1.msra.mxu0 %v46
    %265 = vmatprep.subr.mxu0 0.0
    %266 = vmatpush1.msra.mxu0 %v45
    %267 = vmatprep.subr.mxu0 0.0
    %268 = vmatpush1.msra.mxu0 %v44
    %269 = vmatprep.subr.mxu0 0.0
    %270 = vmatpush2.msra.mxu0 0.0
    %271 = vmatprep.subr.mxu0 0.0
    %272 = vmatpush2.msra.mxu0 0.0
    %273 = vmatprep.subr.mxu0 0.0
    %274 = vmatpush2.msra.mxu0 0.0
    %275 = vmatprep.subr.mxu0 0.0
    %276 = vmatpush2.msra.mxu0 0.0
    %277 = vmatprep.subr.mxu0 0.0
    %278 = vmatpush2.msra.mxu0 0.0
    %279 = vmatprep.subr.mxu0 0.0
    %280 = vmatpush2.msra.mxu0 0.0
    %281 = vmatprep.subr.mxu0 0.0
    %282 = vmatpush2.msra.mxu0 0.0
    %283 = vmatprep.subr.mxu0 0.0
    %284 = vmatpush2.msra.mxu0 0.0
    %285 = vmatprep.subr.mxu0 0.0
    %286 = vmatpush2.msra.mxu0 0.0
    %287 = vmatprep.subr.mxu0 0.0
    %288 = vmatpush2.msra.mxu0 0.0
    %289 = vmatprep.subr.mxu0 0.0
    %290 = vmatpush2.msra.mxu0 0.0
    %291 = vmatprep.subr.mxu0 0.0
    %292 = vmatpush2.msra.mxu0 0.0
    %293 = vmatprep.subr.mxu0 0.0
    %294 = vmatpush2.msra.mxu0 0.0
    %295 = vmatprep.subr.mxu0 0.0
    %296 = vmatpush2.msra.mxu0 0.0
    %297 = vmatprep.subr.mxu0 0.0
    %298 = vmatpush2.msra.mxu0 0.0
    %299 = vmatprep.subr.mxu0 0.0
    %300 = vmatpush2.msra.mxu0 0.0
    %301 = vmatprep.mubr.f32.mxu0 0.0
    %302 = vmatmul.mubr.f32.gmra.mxu0 %v235
    %v303 = vpop.f32.mrf.mxu0
    %v304 = vadd.f32 %v57, %v303
    %v305 = vpop.f32.mrf.mxu0
    %306 = vdwg.mxu0
    %v307 = vadd.f32 %v304, %v234
    %v308 = vtanh.pop %v307
    %v309 = vmax.f32 %v308, 0.0
    %v311 = vsel %vm219, %v309, 0
    %313 = vmatprep.subr.mxu0 0.0
    %314 = vmatpush1.msra.mxu0 0.0
    %315 = vmatprep.subr.mxu0 0.0
    %316 = vmatpush1.msra.mxu0 0.0
    %317 = vmatprep.subr.mxu0 0.0
    %318 = vmatpush1.msra.mxu0 0.0
    %319 = vmatprep.subr.mxu0 0.0
    %320 = vmatpush1.msra.mxu0 0.0
    %321 = vmatprep.subr.mxu0 0.0
    %322 = vmatpush1.msra.mxu0 0.0
    %323 = vmatprep.subr.mxu0 0.0
    %324 = vmatpush1.msra.mxu0 0.0
    %325 = vmatprep.subr.mxu0 0.0
    %326 = vmatpush1.msra.mxu0 0.0
    %327 = vmatprep.subr.mxu0 0.0
    %328 = vmatpush1.msra.mxu0 0.0
    %329 = vmatprep.subr.mxu0 0.0
    %330 = vmatpush1.msra.mxu0 0.0
    %331 = vmatprep.subr.mxu0 0.0
    %332 = vmatpush1.msra.mxu0 0.0
    %333 = vmatprep.subr.mxu0 0.0
    %334 = vmatpush1.msra.mxu0 0.0
    %335 = vmatprep.subr.mxu0 0.0
    %336 = vmatpush1.msra.mxu0 0.0
    %337 = vmatprep.subr.mxu0 0.0
    %338 = vmatpush1.msra.mxu0 %v51
    %339 = vmatprep.subr.mxu0 0.0
    %340 = vmatpush1.msra.mxu0 %v50
    %341 = vmatprep.subr.mxu0 0.0
    %342 = vmatpush1.msra.mxu0 %v49
    %343 = vmatprep.subr.mxu0 0.0
    %344 = vmatpush1.msra.mxu0 %v48
    %345 = vmatprep.subr.mxu0 0.0
    %346 = vmatpush2.msra.mxu0 0.0
    %347 = vmatprep.subr.mxu0 0.0
    %348 = vmatpush2.msra.mxu0 0.0
    %349 = vmatprep.subr.mxu0 0.0
    %350 = vmatpush2.msra.mxu0 0.0
    %351 = vmatprep.subr.mxu0 0.0
    %352 = vmatpush2.msra.mxu0 0.0
    %353 = vmatprep.subr.mxu0 0.0
    %354 = vmatpush2.msra.mxu0 0.0
    %355 = vmatprep.subr.mxu0 0.0
    %356 = vmatpush2.msra.mxu0 0.0
    %357 = vmatprep.subr.mxu0 0.0
    %358 = vmatpush2.msra.mxu0 0.0
    %359 = vmatprep.subr.mxu0 0.0
    %360 = vmatpush2.msra.mxu0 0.0
    %361 = vmatprep.subr.mxu0 0.0
    %362 = vmatpush2.msra.mxu0 0.0
    %363 = vmatprep.subr.mxu0 0.0
    %364 = vmatpush2.msra.mxu0 0.0
    %365 = vmatprep.subr.mxu0 0.0
    %366 = vmatpush2.msra.mxu0 0.0
    %367 = vmatprep.subr.mxu0 0.0
    %368 = vmatpush2.msra.mxu0 0.0
    %369 = vmatprep.subr.mxu0 0.0
    %370 = vmatpush2.msra.mxu0 0.0
    %371 = vmatprep.subr.mxu0 0.0
    %372 = vmatpush2.msra.mxu0 0.0
    %373 = vmatprep.subr.mxu0 0.0
    %374 = vmatpush2.msra.mxu0 0.0
    %375 = vmatprep.subr.mxu0 0.0
    %376 = vmatpush2.msra.mxu0 0.0
    %377 = vmatprep.mubr.f32.mxu0 0.0
    %378 = vmatmul.mubr.f32.gmra.mxu0 %v311
    %v379 = vpop.f32.mrf.mxu0
    %v380 = vadd.f32 %v64, %v379
    %v381 = vpop.f32.mrf.mxu0
    %382 = vdwg.mxu0
    %v383 = vmax.f32 %v380, 0.0
    %384 = vst.msk [vmem:[#allocation2] sm:$0xff] %vm219, %v383
    %s385 = scalar_lea.vmem [#allocation2], 8
    %v386 = vld [vmem:[%s385] sm:$0xff]
    %v388 = vsel %vm219, %v383, 0
    %390 = vmatprep.subr.mxu0 0.0
    %391 = vmatpush1.msra.mxu0 0.0
    %392 = vmatprep.subr.mxu0 0.0
    %393 = vmatpush1.msra.mxu0 0.0
    %394 = vmatprep.subr.mxu0 0.0
    %395 = vmatpush1.msra.mxu0 0.0
    %396 = vmatprep.subr.mxu0 0.0
    %397 = vmatpush1.msra.mxu0 0.0
    %398 = vmatprep.subr.mxu0 0.0
    %399 = vmatpush1.msra.mxu0 0.0
    %400 = vmatprep.subr.mxu0 0.0
    %401 = vmatpush1.msra.mxu0 0.0
    %402 = vmatprep.subr.mxu0 0.0
    %403 = vmatpush1.msra.mxu0 0.0
    %404 = vmatprep.subr.mxu0 0.0
    %405 = vmatpush1.msra.mxu0 0.0
    %406 = vmatprep.subr.mxu0 0.0
    %407 = vmatpush1.msra.mxu0 0.0
    %408 = vmatprep.subr.mxu0 0.0
    %409 = vmatpush1.msra.mxu0 0.0
    %410 = vmatprep.subr.mxu0 0.0
    %411 = vmatpush1.msra.mxu0 0.0
    %412 = vmatprep.subr.mxu0 0.0
    %413 = vmatpush1.msra.mxu0 0.0
    %414 = vmatprep.subr.mxu0 0.0
    %415 = vmatpush1.msra.mxu0 %v47
    %416 = vmatprep.subr.mxu0 0.0
    %417 = vmatpush1.msra.mxu0 %v46
    %418 = vmatprep.subr.mxu0 0.0
    %419 = vmatpush1.msra.mxu0 %v45
    %420 = vmatprep.subr.mxu0 0.0
    %421 = vmatpush1.msra.mxu0 %v44
    %422 = vmatprep.subr.mxu0 0.0
    %423 = vmatpush2.msra.mxu0 0.0
    %424 = vmatprep.subr.mxu0 0.0
    %425 = vmatpush2.msra.mxu0 0.0
    %426 = vmatprep.subr.mxu0 0.0
    %427 = vmatpush2.msra.mxu0 0.0
    %428 = vmatprep.subr.mxu0 0.0
    %429 = vmatpush2.msra.mxu0 0.0
    %430 = vmatprep.subr.mxu0 0.0
    %431 = vmatpush2.msra.mxu0 0.0
    %432 = vmatprep.subr.mxu0 0.0
    %433 = vmatpush2.msra.mxu0 0.0
    %434 = vmatprep.subr.mxu0 0.0
    %435 = vmatpush2.msra.mxu0 0.0
    %436 = vmatprep.subr.mxu0 0.0
    %437 = vmatpush2.msra.mxu0 0.0
    %438 = vmatprep.subr.mxu0 0.0
    %439 = vmatpush2.msra.mxu0 0.0
    %440 = vmatprep.subr.mxu0 0.0
    %441 = vmatpush2.msra.mxu0 0.0
    %442 = vmatprep.subr.mxu0 0.0
    %443 = vmatpush2.msra.mxu0 0.0
    %444 = vmatprep.subr.mxu0 0.0
    %445 = vmatpush2.msra.mxu0 0.0
    %446 = vmatprep.subr.mxu0 0.0
    %447 = vmatpush2.msra.mxu0 0.0
    %448 = vmatprep.subr.mxu0 0.0
    %449 = vmatpush2.msra.mxu0 0.0
    %450 = vmatprep.subr.mxu0 0.0
    %451 = vmatpush2.msra.mxu0 0.0
    %452 = vmatprep.subr.mxu0 0.0
    %453 = vmatpush2.msra.mxu0 0.0
    %454 = vmatprep.mubr.f32.mxu0 0.0
    %455 = vmatmul.mubr.f32.gmra.mxu0 %v388
    %v456 = vpop.f32.mrf.mxu0
    %v457 = vadd.f32 %v57, %v456
    %v458 = vpop.f32.mrf.mxu0
    %459 = vdwg.mxu0
    %v460 = vadd.f32 %v457, %v386
    %v461 = vtanh.pop %v460
    %v462 = vmax.f32 %v461, 0.0
    %v464 = vsel %vm219, %v462, 0
    %466 = vmatprep.subr.mxu0 0.0
    %467 = vmatpush1.msra.mxu0 0.0
    %468 = vmatprep.subr.mxu0 0.0
    %469 = vmatpush1.msra.mxu0 0.0
    %470 = vmatprep.subr.mxu0 0.0
    %471 = vmatpush1.msra.mxu0 0.0
    %472 = vmatprep.subr.mxu0 0.0
    %473 = vmatpush1.msra.mxu0 0.0
    %474 = vmatprep.subr.mxu0 0.0
    %475 = vmatpush1.msra.mxu0 0.0
    %476 = vmatprep.subr.mxu0 0.0
    %477 = vmatpush1.msra.mxu0 0.0
    %478 = vmatprep.subr.mxu0 0.0
    %479 = vmatpush1.msra.mxu0 0.0
    %480 = vmatprep.subr.mxu0 0.0
    %481 = vmatpush1.msra.mxu0 0.0
    %482 = vmatprep.subr.mxu0 0.0
    %483 = vmatpush1.msra.mxu0 0.0
    %484 = vmatprep.subr.mxu0 0.0
    %485 = vmatpush1.msra.mxu0 0.0
    %486 = vmatprep.subr.mxu0 0.0
    %487 = vmatpush1.msra.mxu0 0.0
    %488 = vmatprep.subr.mxu0 0.0
    %489 = vmatpush1.msra.mxu0 0.0
    %490 = vmatprep.subr.mxu0 0.0
    %491 = vmatpush1.msra.mxu0 %v51
    %492 = vmatprep.subr.mxu0 0.0
    %493 = vmatpush1.msra.mxu0 %v50
    %494 = vmatprep.subr.mxu0 0.0
    %495 = vmatpush1.msra.mxu0 %v49
    %496 = vmatprep.subr.mxu0 0.0
    %497 = vmatpush1.msra.mxu0 %v48
    %498 = vmatprep.subr.mxu0 0.0
    %499 = vmatpush2.msra.mxu0 0.0
    %500 = vmatprep.subr.mxu0 0.0
    %501 = vmatpush2.msra.mxu0 0.0
    %502 = vmatprep.subr.mxu0 0.0
    %503 = vmatpush2.msra.mxu0 0.0
    %504 = vmatprep.subr.mxu0 0.0
    %505 = vmatpush2.msra.mxu0 0.0
    %506 = vmatprep.subr.mxu0 0.0
    %507 = vmatpush2.msra.mxu0 0.0
    %508 = vmatprep.subr.mxu0 0.0
    %509 = vmatpush2.msra.mxu0 0.0
    %510 = vmatprep.subr.mxu0 0.0
    %511 = vmatpush2.msra.mxu0 0.0
    %512 = vmatprep.subr.mxu0 0.0
    %513 = vmatpush2.msra.mxu0 0.0
    %514 = vmatprep.subr.mxu0 0.0
    %515 = vmatpush2.msra.mxu0 0.0
    %516 = vmatprep.subr.mxu0 0.0
    %517 = vmatpush2.msra.mxu0 0.0
    %518 = vmatprep.subr.mxu0 0.0
    %519 = vmatpush2.msra.mxu0 0.0
    %520 = vmatprep.subr.mxu0 0.0
    %521 = vmatpush2.msra.mxu0 0.0
    %522 = vmatprep.subr.mxu0 0.0
    %523 = vmatpush2.msra.mxu0 0.0
    %524 = vmatprep.subr.mxu0 0.0
    %525 = vmatpush2.msra.mxu0 0.0
    %526 = vmatprep.subr.mxu0 0.0
    %527 = vmatpush2.msra.mxu0 0.0
    %528 = vmatprep.subr.mxu0 0.0
    %529 = vmatpush2.msra.mxu0 0.0
    %530 = vmatprep.mubr.f32.mxu0 0.0
    %531 = vmatmul.mubr.f32.gmra.mxu0 %v464
    %v532 = vpop.f32.mrf.mxu0
    %v533 = vadd.f32 %v64, %v532
    %v534 = vpop.f32.mrf.mxu0
    %535 = vdwg.mxu0
    %v536 = vmax.f32 %v533, 0.0
    %537 = vst.msk [vmem:[%s385] sm:$0xff] %vm219, %v536
    %s538 = scalar_lea.vmem [#allocation2], 16
    %v539 = vld [vmem:[%s538] sm:$0xff]
    %v541 = vsel %vm219, %v536, 0
    %543 = vmatprep.subr.mxu0 0.0
    %544 = vmatpush1.msra.mxu0 0.0
    %545 = vmatprep.subr.mxu0 0.0
    %546 = vmatpush1.msra.mxu0 0.0
    %547 = vmatprep.subr.mxu0 0.0
    %548 = vmatpush1.msra.mxu0 0.0
    %549 = vmatprep.subr.mxu0 0.0
    %550 = vmatpush1.msra.mxu0 0.0
    %551 = vmatprep.subr.mxu0 0.0
    %552 = vmatpush1.msra.mxu0 0.0
    %553 = vmatprep.subr.mxu0 0.0
    %554 = vmatpush1.msra.mxu0 0.0
    %555 = vmatprep.subr.mxu0 0.0
    %556 = vmatpush1.msra.mxu0 0.0
    %557 = vmatprep.subr.mxu0 0.0
    %558 = vmatpush1.msra.mxu0 0.0
    %559 = vmatprep.subr.mxu0 0.0
    %560 = vmatpush1.msra.mxu0 0.0
    %561 = vmatprep.subr.mxu0 0.0
    %562 = vmatpush1.msra.mxu0 0.0
    %563 = vmatprep.subr.mxu0 0.0
    %564 = vmatpush1.msra.mxu0 0.0
    %565 = vmatprep.subr.mxu0 0.0
    %566 = vmatpush1.msra.mxu0 0.0
    %567 = vmatprep.subr.mxu0 0.0
    %568 = vmatpush1.msra.mxu0 %v47
    %569 = vmatprep.subr.mxu0 0.0
    %570 = vmatpush1.msra.mxu0 %v46
    %571 = vmatprep.subr.mxu0 0.0
    %572 = vmatpush1.msra.mxu0 %v45
    %573 = vmatprep.subr.mxu0 0.0
    %574 = vmatpush1.msra.mxu0 %v44
    %575 = vmatprep.subr.mxu0 0.0
    %576 = vmatpush2.msra.mxu0 0.0
    %577 = vmatprep.subr.mxu0 0.0
    %578 = vmatpush2.msra.mxu0 0.0
    %579 = vmatprep.subr.mxu0 0.0
    %580 = vmatpush2.msra.mxu0 0.0
    %581 = vmatprep.subr.mxu0 0.0
    %582 = vmatpush2.msra.mxu0 0.0
    %583 = vmatprep.subr.mxu0 0.0
    %584 = vmatpush2.msra.mxu0 0.0
    %585 = vmatprep.subr.mxu0 0.0
    %586 = vmatpush2.msra.mxu0 0.0
    %587 = vmatprep.subr.mxu0 0.0
    %588 = vmatpush2.msra.mxu0 0.0
    %589 = vmatprep.subr.mxu0 0.0
    %590 = vmatpush2.msra.mxu0 0.0
    %591 = vmatprep.subr.mxu0 0.0
    %592 = vmatpush2.msra.mxu0 0.0
    %593 = vmatprep.subr.mxu0 0.0
    %594 = vmatpush2.msra.mxu0 0.0
    %595 = vmatprep.subr.mxu0 0.0
    %596 = vmatpush2.msra.mxu0 0.0
    %597 = vmatprep.subr.mxu0 0.0
    %598 = vmatpush2.msra.mxu0 0.0
    %599 = vmatprep.subr.mxu0 0.0
    %600 = vmatpush2.msra.mxu0 0.0
    %601 = vmatprep.subr.mxu0 0.0
    %602 = vmatpush2.msra.mxu0 0.0
    %603 = vmatprep.subr.mxu0 0.0
    %604 = vmatpush2.msra.mxu0 0.0
    %605 = vmatprep.subr.mxu0 0.0
    %606 = vmatpush2.msra.mxu0 0.0
    %607 = vmatprep.mubr.f32.mxu0 0.0
    %608 = vmatmul.mubr.f32.gmra.mxu0 %v541
    %v609 = vpop.f32.mrf.mxu0
    %v610 = vadd.f32 %v57, %v609
    %v611 = vpop.f32.mrf.mxu0
    %612 = vdwg.mxu0
    %v613 = vadd.f32 %v610, %v539
    %v614 = vtanh.pop %v613
    %v615 = vmax.f32 %v614, 0.0
    %v617 = vsel %vm219, %v615, 0
    %619 = vmatprep.subr.mxu0 0.0
    %620 = vmatpush1.msra.mxu0 0.0
    %621 = vmatprep.subr.mxu0 0.0
    %622 = vmatpush1.msra.mxu0 0.0
    %623 = vmatprep.subr.mxu0 0.0
    %624 = vmatpush1.msra.mxu0 0.0
    %625 = vmatprep.subr.mxu0 0.0
    %626 = vmatpush1.msra.mxu0 0.0
    %627 = vmatprep.subr.mxu0 0.0
    %628 = vmatpush1.msra.mxu0 0.0
    %629 = vmatprep.subr.mxu0 0.0
    %630 = vmatpush1.msra.mxu0 0.0
    %631 = vmatprep.subr.mxu0 0.0
    %632 = vmatpush1.msra.mxu0 0.0
    %633 = vmatprep.subr.mxu0 0.0
    %634 = vmatpush1.msra.mxu0 0.0
    %635 = vmatprep.subr.mxu0 0.0
    %636 = vmatpush1.msra.mxu0 0.0
    %637 = vmatprep.subr.mxu0 0.0
    %638 = vmatpush1.msra.mxu0 0.0
    %639 = vmatprep.subr.mxu0 0.0
    %640 = vmatpush1.msra.mxu0 0.0
    %641 = vmatprep.subr.mxu0 0.0
    %642 = vmatpush1.msra.mxu0 0.0
    %643 = vmatprep.subr.mxu0 0.0
    %644 = vmatpush1.msra.mxu0 %v51
    %645 = vmatprep.subr.mxu0 0.0
    %646 = vmatpush1.msra.mxu0 %v50
    %647 = vmatprep.subr.mxu0 0.0
    %648 = vmatpush1.msra.mxu0 %v49
    %649 = vmatprep.subr.mxu0 0.0
    %650 = vmatpush1.msra.mxu0 %v48
    %651 = vmatprep.subr.mxu0 0.0
    %652 = vmatpush2.msra.mxu0 0.0
    %653 = vmatprep.subr.mxu0 0.0
    %654 = vmatpush2.msra.mxu0 0.0
    %655 = vmatprep.subr.mxu0 0.0
    %656 = vmatpush2.msra.mxu0 0.0
    %657 = vmatprep.subr.mxu0 0.0
    %658 = vmatpush2.msra.mxu0 0.0
    %659 = vmatprep.subr.mxu0 0.0
    %660 = vmatpush2.msra.mxu0 0.0
    %661 = vmatprep.subr.mxu0 0.0
    %662 = vmatpush2.msra.mxu0 0.0
    %663 = vmatprep.subr.mxu0 0.0
    %664 = vmatpush2.msra.mxu0 0.0
    %665 = vmatprep.subr.mxu0 0.0
    %666 = vmatpush2.msra.mxu0 0.0
    %667 = vmatprep.subr.mxu0 0.0
    %668 = vmatpush2.msra.mxu0 0.0
    %669 = vmatprep.subr.mxu0 0.0
    %670 = vmatpush2.msra.mxu0 0.0
    %671 = vmatprep.subr.mxu0 0.0
    %672 = vmatpush2.msra.mxu0 0.0
    %673 = vmatprep.subr.mxu0 0.0
    %674 = vmatpush2.msra.mxu0 0.0
    %675 = vmatprep.subr.mxu0 0.0
    %676 = vmatpush2.msra.mxu0 0.0
    %677 = vmatprep.subr.mxu0 0.0
    %678 = vmatpush2.msra.mxu0 0.0
    %679 = vmatprep.subr.mxu0 0.0
    %680 = vmatpush2.msra.mxu0 0.0
    %681 = vmatprep.subr.mxu0 0.0
    %682 = vmatpush2.msra.mxu0 0.0
    %683 = vmatprep.mubr.f32.mxu0 0.0
    %684 = vmatmul.mubr.f32.gmra.mxu0 %v617
    %v685 = vpop.f32.mrf.mxu0
    %v686 = vadd.f32 %v64, %v685
    %v687 = vpop.f32.mrf.mxu0
    %688 = vdwg.mxu0
    %v689 = vmax.f32 %v686, 0.0
    %690 = vst.msk [vmem:[%s538] sm:$0xff] %vm219, %v689
    %s691 = scalar_lea.vmem [#allocation2], 24
    %v692 = vld [vmem:[%s691] sm:$0xff]
    %v694 = vsel %vm219, %v689, 0
    %696 = vmatprep.subr.mxu0 0.0
    %697 = vmatpush1.msra.mxu0 0.0
    %698 = vmatprep.subr.mxu0 0.0
    %699 = vmatpush1.msra.mxu0 0.0
    %700 = vmatprep.subr.mxu0 0.0
    %701 = vmatpush1.msra.mxu0 0.0
    %702 = vmatprep.subr.mxu0 0.0
    %703 = vmatpush1.msra.mxu0 0.0
    %704 = vmatprep.subr.mxu0 0.0
    %705 = vmatpush1.msra.mxu0 0.0
    %706 = vmatprep.subr.mxu0 0.0
    %707 = vmatpush1.msra.mxu0 0.0
    %708 = vmatprep.subr.mxu0 0.0
    %709 = vmatpush1.msra.mxu0 0.0
    %710 = vmatprep.subr.mxu0 0.0
    %711 = vmatpush1.msra.mxu0 0.0
    %712 = vmatprep.subr.mxu0 0.0
    %713 = vmatpush1.msra.mxu0 0.0
    %714 = vmatprep.subr.mxu0 0.0
    %715 = vmatpush1.msra.mxu0 0.0
    %716 = vmatprep.subr.mxu0 0.0
    %717 = vmatpush1.msra.mxu0 0.0
    %718 = vmatprep.subr.mxu0 0.0
    %719 = vmatpush1.msra.mxu0 0.0
    %720 = vmatprep.subr.mxu0 0.0
    %721 = vmatpush1.msra.mxu0 %v47
    %722 = vmatprep.subr.mxu0 0.0
    %723 = vmatpush1.msra.mxu0 %v46
    %724 = vmatprep.subr.mxu0 0.0
    %725 = vmatpush1.msra.mxu0 %v45
    %726 = vmatprep.subr.mxu0 0.0
    %727 = vmatpush1.msra.mxu0 %v44
    %728 = vmatprep.subr.mxu0 0.0
    %729 = vmatpush2.msra.mxu0 0.0
    %730 = vmatprep.subr.mxu0 0.0
    %731 = vmatpush2.msra.mxu0 0.0
    %732 = vmatprep.subr.mxu0 0.0
    %733 = vmatpush2.msra.mxu0 0.0
    %734 = vmatprep.subr.mxu0 0.0
    %735 = vmatpush2.msra.mxu0 0.0
    %736 = vmatprep.subr.mxu0 0.0
    %737 = vmatpush2.msra.mxu0 0.0
    %738 = vmatprep.subr.mxu0 0.0
    %739 = vmatpush2.msra.mxu0 0.0
    %740 = vmatprep.subr.mxu0 0.0
    %741 = vmatpush2.msra.mxu0 0.0
    %742 = vmatprep.subr.mxu0 0.0
    %743 = vmatpush2.msra.mxu0 0.0
    %744 = vmatprep.subr.mxu0 0.0
    %745 = vmatpush2.msra.mxu0 0.0
    %746 = vmatprep.subr.mxu0 0.0
    %747 = vmatpush2.msra.mxu0 0.0
    %748 = vmatprep.subr.mxu0 0.0
    %749 = vmatpush2.msra.mxu0 0.0
    %750 = vmatprep.subr.mxu0 0.0
    %751 = vmatpush2.msra.mxu0 0.0
    %752 = vmatprep.subr.mxu0 0.0
    %753 = vmatpush2.msra.mxu0 0.0
    %754 = vmatprep.subr.mxu0 0.0
    %755 = vmatpush2.msra.mxu0 0.0
    %756 = vmatprep.subr.mxu0 0.0
    %757 = vmatpush2.msra.mxu0 0.0
    %758 = vmatprep.subr.mxu0 0.0
    %759 = vmatpush2.msra.mxu0 0.0
    %760 = vmatprep.mubr.f32.mxu0 0.0
    %761 = vmatmul.mubr.f32.gmra.mxu0 %v694
    %v762 = vpop.f32.mrf.mxu0
    %v763 = vadd.f32 %v57, %v762
    %v764 = vpop.f32.mrf.mxu0
    %765 = vdwg.mxu0
    %v766 = vadd.f32 %v763, %v692
    %v767 = vtanh.pop %v766
    %v768 = vmax.f32 %v767, 0.0
    %v770 = vsel %vm219, %v768, 0
    %772 = vmatprep.subr.mxu0 0.0
    %773 = vmatpush1.msra.mxu0 0.0
    %774 = vmatprep.subr.mxu0 0.0
    %775 = vmatpush1.msra.mxu0 0.0
    %776 = vmatprep.subr.mxu0 0.0
    %777 = vmatpush1.msra.mxu0 0.0
    %778 = vmatprep.subr.mxu0 0.0
    %779 = vmatpush1.msra.mxu0 0.0
    %780 = vmatprep.subr.mxu0 0.0
    %781 = vmatpush1.msra.mxu0 0.0
    %782 = vmatprep.subr.mxu0 0.0
    %783 = vmatpush1.msra.mxu0 0.0
    %784 = vmatprep.subr.mxu0 0.0
    %785 = vmatpush1.msra.mxu0 0.0
    %786 = vmatprep.subr.mxu0 0.0
    %787 = vmatpush1.msra.mxu0 0.0
    %788 = vmatprep.subr.mxu0 0.0
    %789 = vmatpush1.msra.mxu0 0.0
    %790 = vmatprep.subr.mxu0 0.0
    %791 = vmatpush1.msra.mxu0 0.0
    %792 = vmatprep.subr.mxu0 0.0
    %793 = vmatpush1.msra.mxu0 0.0
    %794 = vmatprep.subr.mxu0 0.0
    %795 = vmatpush1.msra.mxu0 0.0
    %796 = vmatprep.subr.mxu0 0.0
    %797 = vmatpush1.msra.mxu0 %v51
    %798 = vmatprep.subr.mxu0 0.0
    %799 = vmatpush1.msra.mxu0 %v50
    %800 = vmatprep.subr.mxu0 0.0
    %801 = vmatpush1.msra.mxu0 %v49
    %802 = vmatprep.subr.mxu0 0.0
    %803 = vmatpush1.msra.mxu0 %v48
    %804 = vmatprep.subr.mxu0 0.0
    %805 = vmatpush2.msra.mxu0 0.0
    %806 = vmatprep.subr.mxu0 0.0
    %807 = vmatpush2.msra.mxu0 0.0
    %808 = vmatprep.subr.mxu0 0.0
    %809 = vmatpush2.msra.mxu0 0.0
    %810 = vmatprep.subr.mxu0 0.0
    %811 = vmatpush2.msra.mxu0 0.0
    %812 = vmatprep.subr.mxu0 0.0
    %813 = vmatpush2.msra.mxu0 0.0
    %814 = vmatprep.subr.mxu0 0.0
    %815 = vmatpush2.msra.mxu0 0.0
    %816 = vmatprep.subr.mxu0 0.0
    %817 = vmatpush2.msra.mxu0 0.0
    %818 = vmatprep.subr.mxu0 0.0
    %819 = vmatpush2.msra.mxu0 0.0
    %820 = vmatprep.subr.mxu0 0.0
    %821 = vmatpush2.msra.mxu0 0.0
    %822 = vmatprep.subr.mxu0 0.0
    %823 = vmatpush2.msra.mxu0 0.0
    %824 = vmatprep.subr.mxu0 0.0
    %825 = vmatpush2.msra.mxu0 0.0
    %826 = vmatprep.subr.mxu0 0.0
    %827 = vmatpush2.msra.mxu0 0.0
    %828 = vmatprep.subr.mxu0 0.0
    %829 = vmatpush2.msra.mxu0 0.0
    %830 = vmatprep.subr.mxu0 0.0
    %831 = vmatpush2.msra.mxu0 0.0
    %832 = vmatprep.subr.mxu0 0.0
    %833 = vmatpush2.msra.mxu0 0.0
    %834 = vmatprep.subr.mxu0 0.0
    %835 = vmatpush2.msra.mxu0 0.0
    %836 = vmatprep.mubr.f32.mxu0 0.0
    %837 = vmatmul.mubr.f32.gmra.mxu0 %v770
    %v838 = vpop.f32.mrf.mxu0
    %v839 = vadd.f32 %v64, %v838
    %v840 = vpop.f32.mrf.mxu0
    %841 = vdwg.mxu0
    %v842 = vmax.f32 %v839, 0.0
    %843 = vst.msk [vmem:[%s691] sm:$0xff] %vm219, %v842
    %s844 = scalar_lea.vmem [#allocation2], 32
    %v845 = vld [vmem:[%s844] sm:$0xff]
    %v847 = vsel %vm219, %v842, 0
    %849 = vmatprep.subr.mxu0 0.0
    %850 = vmatpush1.msra.mxu0 0.0
    %851 = vmatprep.subr.mxu0 0.0
    %852 = vmatpush1.msra.mxu0 0.0
    %853 = vmatprep.subr.mxu0 0.0
    %854 = vmatpush1.msra.mxu0 0.0
    %855 = vmatprep.subr.mxu0 0.0
    %856 = vmatpush1.msra.mxu0 0.0
    %857 = vmatprep.subr.mxu0 0.0
    %858 = vmatpush1.msra.mxu0 0.0
    %859 = vmatprep.subr.mxu0 0.0
    %860 = vmatpush1.msra.mxu0 0.0
    %861 = vmatprep.subr.mxu0 0.0
    %862 = vmatpush1.msra.mxu0 0.0
    %863 = vmatprep.subr.mxu0 0.0
    %864 = vmatpush1.msra.mxu0 0.0
    %865 = vmatprep.subr.mxu0 0.0
    %866 = vmatpush1.msra.mxu0 0.0
    %867 = vmatprep.subr.mxu0 0.0
    %868 = vmatpush1.msra.mxu0 0.0
    %869 = vmatprep.subr.mxu0 0.0
    %870 = vmatpush1.msra.mxu0 0.0
    %871 = vmatprep.subr.mxu0 0.0
    %872 = vmatpush1.msra.mxu0 0.0
    %873 = vmatprep.subr.mxu0 0.0
    %874 = vmatpush1.msra.mxu0 %v47
    %875 = vmatprep.subr.mxu0 0.0
    %876 = vmatpush1.msra.mxu0 %v46
    %877 = vmatprep.subr.mxu0 0.0
    %878 = vmatpush1.msra.mxu0 %v45
    %879 = vmatprep.subr.mxu0 0.0
    %880 = vmatpush1.msra.mxu0 %v44
    %881 = vmatprep.subr.mxu0 0.0
    %882 = vmatpush2.msra.mxu0 0.0
    %883 = vmatprep.subr.mxu0 0.0
    %884 = vmatpush2.msra.mxu0 0.0
    %885 = vmatprep.subr.mxu0 0.0
    %886 = vmatpush2.msra.mxu0 0.0
    %887 = vmatprep.subr.mxu0 0.0
    %888 = vmatpush2.msra.mxu0 0.0
    %889 = vmatprep.subr.mxu0 0.0
    %890 = vmatpush2.msra.mxu0 0.0
    %891 = vmatprep.subr.mxu0 0.0
    %892 = vmatpush2.msra.mxu0 0.0
    %893 = vmatprep.subr.mxu0 0.0
    %894 = vmatpush2.msra.mxu0 0.0
    %895 = vmatprep.subr.mxu0 0.0
    %896 = vmatpush2.msra.mxu0 0.0
    %897 = vmatprep.subr.mxu0 0.0
    %898 = vmatpush2.msra.mxu0 0.0
    %899 = vmatprep.subr.mxu0 0.0
    %900 = vmatpush2.msra.mxu0 0.0
    %901 = vmatprep.subr.mxu0 0.0
    %902 = vmatpush2.msra.mxu0 0.0
    %903 = vmatprep.subr.mxu0 0.0
    %904 = vmatpush2.msra.mxu0 0.0
    %905 = vmatprep.subr.mxu0 0.0
    %906 = vmatpush2.msra.mxu0 0.0
    %907 = vmatprep.subr.mxu0 0.0
    %908 = vmatpush2.msra.mxu0 0.0
    %909 = vmatprep.subr.mxu0 0.0
    %910 = vmatpush2.msra.mxu0 0.0
    %911 = vmatprep.subr.mxu0 0.0
    %912 = vmatpush2.msra.mxu0 0.0
    %913 = vmatprep.mubr.f32.mxu0 0.0
    %914 = vmatmul.mubr.f32.gmra.mxu0 %v847
    %v915 = vpop.f32.mrf.mxu0
    %v916 = vadd.f32 %v57, %v915
    %v917 = vpop.f32.mrf.mxu0
    %918 = vdwg.mxu0
    %v919 = vadd.f32 %v916, %v845
    %v920 = vtanh.pop %v919
    %v921 = vmax.f32 %v920, 0.0
    %v923 = vsel %vm219, %v921, 0
    %925 = vmatprep.subr.mxu0 0.0
    %926 = vmatpush1.msra.mxu0 0.0
    %927 = vmatprep.subr.mxu0 0.0
    %928 = vmatpush1.msra.mxu0 0.0
    %929 = vmatprep.subr.mxu0 0.0
    %930 = vmatpush1.msra.mxu0 0.0
    %931 = vmatprep.subr.mxu0 0.0
    %932 = vmatpush1.msra.mxu0 0.0
    %933 = vmatprep.subr.mxu0 0.0
    %934 = vmatpush1.msra.mxu0 0.0
    %935 = vmatprep.subr.mxu0 0.0
    %936 = vmatpush1.msra.mxu0 0.0
    %937 = vmatprep.subr.mxu0 0.0
    %938 = vmatpush1.msra.mxu0 0.0
    %939 = vmatprep.subr.mxu0 0.0
    %940 = vmatpush1.msra.mxu0 0.0
    %941 = vmatprep.subr.mxu0 0.0
    %942 = vmatpush1.msra.mxu0 0.0
    %943 = vmatprep.subr.mxu0 0.0
    %944 = vmatpush1.msra.mxu0 0.0
    %945 = vmatprep.subr.mxu0 0.0
    %946 = vmatpush1.msra.mxu0 0.0
    %947 = vmatprep.subr.mxu0 0.0
    %948 = vmatpush1.msra.mxu0 0.0
    %949 = vmatprep.subr.mxu0 0.0
    %950 = vmatpush1.msra.mxu0 %v51
    %951 = vmatprep.subr.mxu0 0.0
    %952 = vmatpush1.msra.mxu0 %v50
    %953 = vmatprep.subr.mxu0 0.0
    %954 = vmatpush1.msra.mxu0 %v49
    %955 = vmatprep.subr.mxu0 0.0
    %956 = vmatpush1.msra.mxu0 %v48
    %957 = vmatprep.subr.mxu0 0.0
    %958 = vmatpush2.msra.mxu0 0.0
    %959 = vmatprep.subr.mxu0 0.0
    %960 = vmatpush2.msra.mxu0 0.0
    %961 = vmatprep.subr.mxu0 0.0
    %962 = vmatpush2.msra.mxu0 0.0
    %963 = vmatprep.subr.mxu0 0.0
    %964 = vmatpush2.msra.mxu0 0.0
    %965 = vmatprep.subr.mxu0 0.0
    %966 = vmatpush2.msra.mxu0 0.0
    %967 = vmatprep.subr.mxu0 0.0
    %968 = vmatpush2.msra.mxu0 0.0
    %969 = vmatprep.subr.mxu0 0.0
    %970 = vmatpush2.msra.mxu0 0.0
    %971 = vmatprep.subr.mxu0 0.0
    %972 = vmatpush2.msra.mxu0 0.0
    %973 = vmatprep.subr.mxu0 0.0
    %974 = vmatpush2.msra.mxu0 0.0
    %975 = vmatprep.subr.mxu0 0.0
    %976 = vmatpush2.msra.mxu0 0.0
    %977 = vmatprep.subr.mxu0 0.0
    %978 = vmatpush2.msra.mxu0 0.0
    %979 = vmatprep.subr.mxu0 0.0
    %980 = vmatpush2.msra.mxu0 0.0
    %981 = vmatprep.subr.mxu0 0.0
    %982 = vmatpush2.msra.mxu0 0.0
    %983 = vmatprep.subr.mxu0 0.0
    %984 = vmatpush2.msra.mxu0 0.0
    %985 = vmatprep.subr.mxu0 0.0
    %986 = vmatpush2.msra.mxu0 0.0
    %987 = vmatprep.subr.mxu0 0.0
    %988 = vmatpush2.msra.mxu0 0.0
    %989 = vmatprep.mubr.f32.mxu0 0.0
    %990 = vmatmul.mubr.f32.gmra.mxu0 %v923
    %v991 = vpop.f32.mrf.mxu0
    %v992 = vadd.f32 %v64, %v991
    %v993 = vpop.f32.mrf.mxu0
    %994 = vdwg.mxu0
    %v995 = vmax.f32 %v992, 0.0
    %996 = vst.msk [vmem:[%s844] sm:$0xff] %vm219, %v995
    %s997 = scalar_lea.vmem [#allocation2], 40
    %v998 = vld [vmem:[%s997] sm:$0xff]
    %v1000 = vsel %vm219, %v995, 0
    %1002 = vmatprep.subr.mxu0 0.0
    %1003 = vmatpush1.msra.mxu0 0.0
    %1004 = vmatprep.subr.mxu0 0.0
    %1005 = vmatpush1.msra.mxu0 0.0
    %1006 = vmatprep.subr.mxu0 0.0
    %1007 = vmatpush1.msra.mxu0 0.0
    %1008 = vmatprep.subr.mxu0 0.0
    %1009 = vmatpush1.msra.mxu0 0.0
    %1010 = vmatprep.subr.mxu0 0.0
    %1011 = vmatpush1.msra.mxu0 0.0
    %1012 = vmatprep.subr.mxu0 0.0
    %1013 = vmatpush1.msra.mxu0 0.0
    %1014 = vmatprep.subr.mxu0 0.0
    %1015 = vmatpush1.msra.mxu0 0.0
    %1016 = vmatprep.subr.mxu0 0.0
    %1017 = vmatpush1.msra.mxu0 0.0
    %1018 = vmatprep.subr.mxu0 0.0
    %1019 = vmatpush1.msra.mxu0 0.0
    %1020 = vmatprep.subr.mxu0 0.0
    %1021 = vmatpush1.msra.mxu0 0.0
    %1022 = vmatprep.subr.mxu0 0.0
    %1023 = vmatpush1.msra.mxu0 0.0
    %1024 = vmatprep.subr.mxu0 0.0
    %1025 = vmatpush1.msra.mxu0 0.0
    %1026 = vmatprep.subr.mxu0 0.0
    %1027 = vmatpush1.msra.mxu0 %v47
    %1028 = vmatprep.subr.mxu0 0.0
    %1029 = vmatpush1.msra.mxu0 %v46
    %1030 = vmatprep.subr.mxu0 0.0
    %1031 = vmatpush1.msra.mxu0 %v45
    %1032 = vmatprep.subr.mxu0 0.0
    %1033 = vmatpush1.msra.mxu0 %v44
    %1034 = vmatprep.subr.mxu0 0.0
    %1035 = vmatpush2.msra.mxu0 0.0
    %1036 = vmatprep.subr.mxu0 0.0
    %1037 = vmatpush2.msra.mxu0 0.0
    %1038 = vmatprep.subr.mxu0 0.0
    %1039 = vmatpush2.msra.mxu0 0.0
    %1040 = vmatprep.subr.mxu0 0.0
    %1041 = vmatpush2.msra.mxu0 0.0
    %1042 = vmatprep.subr.mxu0 0.0
    %1043 = vmatpush2.msra.mxu0 0.0
    %1044 = vmatprep.subr.mxu0 0.0
    %1045 = vmatpush2.msra.mxu0 0.0
    %1046 = vmatprep.subr.mxu0 0.0
    %1047 = vmatpush2.msra.mxu0 0.0
    %1048 = vmatprep.subr.mxu0 0.0
    %1049 = vmatpush2.msra.mxu0 0.0
    %1050 = vmatprep.subr.mxu0 0.0
    %1051 = vmatpush2.msra.mxu0 0.0
    %1052 = vmatprep.subr.mxu0 0.0
    %1053 = vmatpush2.msra.mxu0 0.0
    %1054 = vmatprep.subr.mxu0 0.0
    %1055 = vmatpush2.msra.mxu0 0.0
    %1056 = vmatprep.subr.mxu0 0.0
    %1057 = vmatpush2.msra.mxu0 0.0
    %1058 = vmatprep.subr.mxu0 0.0
    %1059 = vmatpush2.msra.mxu0 0.0
    %1060 = vmatprep.subr.mxu0 0.0
    %1061 = vmatpush2.msra.mxu0 0.0
    %1062 = vmatprep.subr.mxu0 0.0
    %1063 = vmatpush2.msra.mxu0 0.0
    %1064 = vmatprep.subr.mxu0 0.0
    %1065 = vmatpush2.msra.mxu0 0.0
    %1066 = vmatprep.mubr.f32.mxu0 0.0
    %1067 = vmatmul.mubr.f32.gmra.mxu0 %v1000
    %v1068 = vpop.f32.mrf.mxu0
    %v1069 = vadd.f32 %v57, %v1068
    %v1070 = vpop.f32.mrf.mxu0
    %1071 = vdwg.mxu0
    %v1072 = vadd.f32 %v1069, %v998
    %v1073 = vtanh.pop %v1072
    %v1074 = vmax.f32 %v1073, 0.0
    %v1076 = vsel %vm219, %v1074, 0
    %1078 = vmatprep.subr.mxu0 0.0
    %1079 = vmatpush1.msra.mxu0 0.0
    %1080 = vmatprep.subr.mxu0 0.0
    %1081 = vmatpush1.msra.mxu0 0.0
    %1082 = vmatprep.subr.mxu0 0.0
    %1083 = vmatpush1.msra.mxu0 0.0
    %1084 = vmatprep.subr.mxu0 0.0
    %1085 = vmatpush1.msra.mxu0 0.0
    %1086 = vmatprep.subr.mxu0 0.0
    %1087 = vmatpush1.msra.mxu0 0.0
    %1088 = vmatprep.subr.mxu0 0.0
    %1089 = vmatpush1.msra.mxu0 0.0
    %1090 = vmatprep.subr.mxu0 0.0
    %1091 = vmatpush1.msra.mxu0 0.0
    %1092 = vmatprep.subr.mxu0 0.0
    %1093 = vmatpush1.msra.mxu0 0.0
    %1094 = vmatprep.subr.mxu0 0.0
    %1095 = vmatpush1.msra.mxu0 0.0
    %1096 = vmatprep.subr.mxu0 0.0
    %1097 = vmatpush1.msra.mxu0 0.0
    %1098 = vmatprep.subr.mxu0 0.0
    %1099 = vmatpush1.msra.mxu0 0.0
    %1100 = vmatprep.subr.mxu0 0.0
    %1101 = vmatpush1.msra.mxu0 0.0
    %1102 = vmatprep.subr.mxu0 0.0
    %1103 = vmatpush1.msra.mxu0 %v51
    %1104 = vmatprep.subr.mxu0 0.0
    %1105 = vmatpush1.msra.mxu0 %v50
    %1106 = vmatprep.subr.mxu0 0.0
    %1107 = vmatpush1.msra.mxu0 %v49
    %1108 = vmatprep.subr.mxu0 0.0
    %1109 = vmatpush1.msra.mxu0 %v48
    %1110 = vmatprep.subr.mxu0 0.0
    %1111 = vmatpush2.msra.mxu0 0.0
    %1112 = vmatprep.subr.mxu0 0.0
    %1113 = vmatpush2.msra.mxu0 0.0
    %1114 = vmatprep.subr.mxu0 0.0
    %1115 = vmatpush2.msra.mxu0 0.0
    %1116 = vmatprep.subr.mxu0 0.0
    %1117 = vmatpush2.msra.mxu0 0.0
    %1118 = vmatprep.subr.mxu0 0.0
    %1119 = vmatpush2.msra.mxu0 0.0
    %1120 = vmatprep.subr.mxu0 0.0
    %1121 = vmatpush2.msra.mxu0 0.0
    %1122 = vmatprep.subr.mxu0 0.0
    %1123 = vmatpush2.msra.mxu0 0.0
    %1124 = vmatprep.subr.mxu0 0.0
    %1125 = vmatpush2.msra.mxu0 0.0
    %1126 = vmatprep.subr.mxu0 0.0
    %1127 = vmatpush2.msra.mxu0 0.0
    %1128 = vmatprep.subr.mxu0 0.0
    %1129 = vmatpush2.msra.mxu0 0.0
    %1130 = vmatprep.subr.mxu0 0.0
    %1131 = vmatpush2.msra.mxu0 0.0
    %1132 = vmatprep.subr.mxu0 0.0
    %1133 = vmatpush2.msra.mxu0 0.0
    %1134 = vmatprep.subr.mxu0 0.0
    %1135 = vmatpush2.msra.mxu0 0.0
    %1136 = vmatprep.subr.mxu0 0.0
    %1137 = vmatpush2.msra.mxu0 0.0
    %1138 = vmatprep.subr.mxu0 0.0
    %1139 = vmatpush2.msra.mxu0 0.0
    %1140 = vmatprep.subr.mxu0 0.0
    %1141 = vmatpush2.msra.mxu0 0.0
    %1142 = vmatprep.mubr.f32.mxu0 0.0
    %1143 = vmatmul.mubr.f32.gmra.mxu0 %v1076
    %v1144 = vpop.f32.mrf.mxu0
    %v1145 = vadd.f32 %v64, %v1144
    %v1146 = vpop.f32.mrf.mxu0
    %1147 = vdwg.mxu0
    %v1148 = vmax.f32 %v1145, 0.0
    %1149 = vst.msk [vmem:[%s997] sm:$0xff] %vm219, %v1148
    %s1150 = scalar_lea.vmem [#allocation2], 48
    %v1151 = vld [vmem:[%s1150] sm:$0xff]
    %v1153 = vsel %vm219, %v1148, 0
    %1155 = vmatprep.subr.mxu0 0.0
    %1156 = vmatpush1.msra.mxu0 0.0
    %1157 = vmatprep.subr.mxu0 0.0
    %1158 = vmatpush1.msra.mxu0 0.0
    %1159 = vmatprep.subr.mxu0 0.0
    %1160 = vmatpush1.msra.mxu0 0.0
    %1161 = vmatprep.subr.mxu0 0.0
    %1162 = vmatpush1.msra.mxu0 0.0
    %1163 = vmatprep.subr.mxu0 0.0
    %1164 = vmatpush1.msra.mxu0 0.0
    %1165 = vmatprep.subr.mxu0 0.0
    %1166 = vmatpush1.msra.mxu0 0.0
    %1167 = vmatprep.subr.mxu0 0.0
    %1168 = vmatpush1.msra.mxu0 0.0
    %1169 = vmatprep.subr.mxu0 0.0
    %1170 = vmatpush1.msra.mxu0 0.0
    %1171 = vmatprep.subr.mxu0 0.0
    %1172 = vmatpush1.msra.mxu0 0.0
    %1173 = vmatprep.subr.mxu0 0.0
    %1174 = vmatpush1.msra.mxu0 0.0
    %1175 = vmatprep.subr.mxu0 0.0
    %1176 = vmatpush1.msra.mxu0 0.0
    %1177 = vmatprep.subr.mxu0 0.0
    %1178 = vmatpush1.msra.mxu0 0.0
    %1179 = vmatprep.subr.mxu0 0.0
    %1180 = vmatpush1.msra.mxu0 %v47
    %1181 = vmatprep.subr.mxu0 0.0
    %1182 = vmatpush1.msra.mxu0 %v46
    %1183 = vmatprep.subr.mxu0 0.0
    %1184 = vmatpush1.msra.mxu0 %v45
    %1185 = vmatprep.subr.mxu0 0.0
    %1186 = vmatpush1.msra.mxu0 %v44
    %1187 = vmatprep.subr.mxu0 0.0
    %1188 = vmatpush2.msra.mxu0 0.0
    %1189 = vmatprep.subr.mxu0 0.0
    %1190 = vmatpush2.msra.mxu0 0.0
    %1191 = vmatprep.subr.mxu0 0.0
    %1192 = vmatpush2.msra.mxu0 0.0
    %1193 = vmatprep.subr.mxu0 0.0
    %1194 = vmatpush2.msra.mxu0 0.0
    %1195 = vmatprep.subr.mxu0 0.0
    %1196 = vmatpush2.msra.mxu0 0.0
    %1197 = vmatprep.subr.mxu0 0.0
    %1198 = vmatpush2.msra.mxu0 0.0
    %1199 = vmatprep.subr.mxu0 0.0
    %1200 = vmatpush2.msra.mxu0 0.0
    %1201 = vmatprep.subr.mxu0 0.0
    %1202 = vmatpush2.msra.mxu0 0.0
    %1203 = vmatprep.subr.mxu0 0.0
    %1204 = vmatpush2.msra.mxu0 0.0
    %1205 = vmatprep.subr.mxu0 0.0
    %1206 = vmatpush2.msra.mxu0 0.0
    %1207 = vmatprep.subr.mxu0 0.0
    %1208 = vmatpush2.msra.mxu0 0.0
    %1209 = vmatprep.subr.mxu0 0.0
    %1210 = vmatpush2.msra.mxu0 0.0
    %1211 = vmatprep.subr.mxu0 0.0
    %1212 = vmatpush2.msra.mxu0 0.0
    %1213 = vmatprep.subr.mxu0 0.0
    %1214 = vmatpush2.msra.mxu0 0.0
    %1215 = vmatprep.subr.mxu0 0.0
    %1216 = vmatpush2.msra.mxu0 0.0
    %1217 = vmatprep.subr.mxu0 0.0
    %1218 = vmatpush2.msra.mxu0 0.0
    %1219 = vmatprep.mubr.f32.mxu0 0.0
    %1220 = vmatmul.mubr.f32.gmra.mxu0 %v1153
    %v1221 = vpop.f32.mrf.mxu0
    %v1222 = vadd.f32 %v57, %v1221
    %v1223 = vpop.f32.mrf.mxu0
    %1224 = vdwg.mxu0
    %v1225 = vadd.f32 %v1222, %v1151
    %v1226 = vtanh.pop %v1225
    %v1227 = vmax.f32 %v1226, 0.0
    %v1229 = vsel %vm219, %v1227, 0
    %1231 = vmatprep.subr.mxu0 0.0
    %1232 = vmatpush1.msra.mxu0 0.0
    %1233 = vmatprep.subr.mxu0 0.0
    %1234 = vmatpush1.msra.mxu0 0.0
    %1235 = vmatprep.subr.mxu0 0.0
    %1236 = vmatpush1.msra.mxu0 0.0
    %1237 = vmatprep.subr.mxu0 0.0
    %1238 = vmatpush1.msra.mxu0 0.0
    %1239 = vmatprep.subr.mxu0 0.0
    %1240 = vmatpush1.msra.mxu0 0.0
    %1241 = vmatprep.subr.mxu0 0.0
    %1242 = vmatpush1.msra.mxu0 0.0
    %1243 = vmatprep.subr.mxu0 0.0
    %1244 = vmatpush1.msra.mxu0 0.0
    %1245 = vmatprep.subr.mxu0 0.0
    %1246 = vmatpush1.msra.mxu0 0.0
    %1247 = vmatprep.subr.mxu0 0.0
    %1248 = vmatpush1.msra.mxu0 0.0
    %1249 = vmatprep.subr.mxu0 0.0
    %1250 = vmatpush1.msra.mxu0 0.0
    %1251 = vmatprep.subr.mxu0 0.0
    %1252 = vmatpush1.msra.mxu0 0.0
    %1253 = vmatprep.subr.mxu0 0.0
    %1254 = vmatpush1.msra.mxu0 0.0
    %1255 = vmatprep.subr.mxu0 0.0
    %1256 = vmatpush1.msra.mxu0 %v51
    %1257 = vmatprep.subr.mxu0 0.0
    %1258 = vmatpush1.msra.mxu0 %v50
    %1259 = vmatprep.subr.mxu0 0.0
    %1260 = vmatpush1.msra.mxu0 %v49
    %1261 = vmatprep.subr.mxu0 0.0
    %1262 = vmatpush1.msra.mxu0 %v48
    %1263 = vmatprep.subr.mxu0 0.0
    %1264 = vmatpush2.msra.mxu0 0.0
    %1265 = vmatprep.subr.mxu0 0.0
    %1266 = vmatpush2.msra.mxu0 0.0
    %1267 = vmatprep.subr.mxu0 0.0
    %1268 = vmatpush2.msra.mxu0 0.0
    %1269 = vmatprep.subr.mxu0 0.0
    %1270 = vmatpush2.msra.mxu0 0.0
    %1271 = vmatprep.subr.mxu0 0.0
    %1272 = vmatpush2.msra.mxu0 0.0
    %1273 = vmatprep.subr.mxu0 0.0
    %1274 = vmatpush2.msra.mxu0 0.0
    %1275 = vmatprep.subr.mxu0 0.0
    %1276 = vmatpush2.msra.mxu0 0.0
    %1277 = vmatprep.subr.mxu0 0.0
    %1278 = vmatpush2.msra.mxu0 0.0
    %1279 = vmatprep.subr.mxu0 0.0
    %1280 = vmatpush2.msra.mxu0 0.0
    %1281 = vmatprep.subr.mxu0 0.0
    %1282 = vmatpush2.msra.mxu0 0.0
    %1283 = vmatprep.subr.mxu0 0.0
    %1284 = vmatpush2.msra.mxu0 0.0
    %1285 = vmatprep.subr.mxu0 0.0
    %1286 = vmatpush2.msra.mxu0 0.0
    %1287 = vmatprep.subr.mxu0 0.0
    %1288 = vmatpush2.msra.mxu0 0.0
    %1289 = vmatprep.subr.mxu0 0.0
    %1290 = vmatpush2.msra.mxu0 0.0
    %1291 = vmatprep.subr.mxu0 0.0
    %1292 = vmatpush2.msra.mxu0 0.0
    %1293 = vmatprep.subr.mxu0 0.0
    %1294 = vmatpush2.msra.mxu0 0.0
    %1295 = vmatprep.mubr.f32.mxu0 0.0
    %1296 = vmatmul.mubr.f32.gmra.mxu0 %v1229
    %v1297 = vpop.f32.mrf.mxu0
    %v1298 = vadd.f32 %v64, %v1297
    %v1299 = vpop.f32.mrf.mxu0
    %1300 = vdwg.mxu0
    %v1301 = vmax.f32 %v1298, 0.0
    %1302 = vst.msk [vmem:[%s1150] sm:$0xff] %vm219, %v1301
    %s1303 = scalar_lea.vmem [#allocation2], 56
    %v1304 = vld [vmem:[%s1303] sm:$0xff]
    %v1306 = vsel %vm219, %v1301, 0
    %1308 = vmatprep.subr.mxu0 0.0
    %1309 = vmatpush1.msra.mxu0 0.0
    %1310 = vmatprep.subr.mxu0 0.0
    %1311 = vmatpush1.msra.mxu0 0.0
    %1312 = vmatprep.subr.mxu0 0.0
    %1313 = vmatpush1.msra.mxu0 0.0
    %1314 = vmatprep.subr.mxu0 0.0
    %1315 = vmatpush1.msra.mxu0 0.0
    %1316 = vmatprep.subr.mxu0 0.0
    %1317 = vmatpush1.msra.mxu0 0.0
    %1318 = vmatprep.subr.mxu0 0.0
    %1319 = vmatpush1.msra.mxu0 0.0
    %1320 = vmatprep.subr.mxu0 0.0
    %1321 = vmatpush1.msra.mxu0 0.0
    %1322 = vmatprep.subr.mxu0 0.0
    %1323 = vmatpush1.msra.mxu0 0.0
    %1324 = vmatprep.subr.mxu0 0.0
    %1325 = vmatpush1.msra.mxu0 0.0
    %1326 = vmatprep.subr.mxu0 0.0
    %1327 = vmatpush1.msra.mxu0 0.0
    %1328 = vmatprep.subr.mxu0 0.0
    %1329 = vmatpush1.msra.mxu0 0.0
    %1330 = vmatprep.subr.mxu0 0.0
    %1331 = vmatpush1.msra.mxu0 0.0
    %1332 = vmatprep.subr.mxu0 0.0
    %1333 = vmatpush1.msra.mxu0 %v47
    %1334 = vmatprep.subr.mxu0 0.0
    %1335 = vmatpush1.msra.mxu0 %v46
    %1336 = vmatprep.subr.mxu0 0.0
    %1337 = vmatpush1.msra.mxu0 %v45
    %1338 = vmatprep.subr.mxu0 0.0
    %1339 = vmatpush1.msra.mxu0 %v44
    %1340 = vmatprep.subr.mxu0 0.0
    %1341 = vmatpush2.msra.mxu0 0.0
    %1342 = vmatprep.subr.mxu0 0.0
    %1343 = vmatpush2.msra.mxu0 0.0
    %1344 = vmatprep.subr.mxu0 0.0
    %1345 = vmatpush2.msra.mxu0 0.0
    %1346 = vmatprep.subr.mxu0 0.0
    %1347 = vmatpush2.msra.mxu0 0.0
    %1348 = vmatprep.subr.mxu0 0.0
    %1349 = vmatpush2.msra.mxu0 0.0
    %1350 = vmatprep.subr.mxu0 0.0
    %1351 = vmatpush2.msra.mxu0 0.0
    %1352 = vmatprep.subr.mxu0 0.0
    %1353 = vmatpush2.msra.mxu0 0.0
    %1354 = vmatprep.subr.mxu0 0.0
    %1355 = vmatpush2.msra.mxu0 0.0
    %1356 = vmatprep.subr.mxu0 0.0
    %1357 = vmatpush2.msra.mxu0 0.0
    %1358 = vmatprep.subr.mxu0 0.0
    %1359 = vmatpush2.msra.mxu0 0.0
    %1360 = vmatprep.subr.mxu0 0.0
    %1361 = vmatpush2.msra.mxu0 0.0
    %1362 = vmatprep.subr.mxu0 0.0
    %1363 = vmatpush2.msra.mxu0 0.0
    %1364 = vmatprep.subr.mxu0 0.0
    %1365 = vmatpush2.msra.mxu0 0.0
    %1366 = vmatprep.subr.mxu0 0.0
    %1367 = vmatpush2.msra.mxu0 0.0
    %1368 = vmatprep.subr.mxu0 0.0
    %1369 = vmatpush2.msra.mxu0 0.0
    %1370 = vmatprep.subr.mxu0 0.0
    %1371 = vmatpush2.msra.mxu0 0.0
    %1372 = vmatprep.mubr.f32.mxu0 0.0
    %1373 = vmatmul.mubr.f32.gmra.mxu0 %v1306
    %v1374 = vpop.f32.mrf.mxu0
    %v1375 = vadd.f32 %v57, %v1374
    %v1376 = vpop.f32.mrf.mxu0
    %1377 = vdwg.mxu0
    %v1378 = vadd.f32 %v1375, %v1304
    %v1379 = vtanh.pop %v1378
    %v1380 = vmax.f32 %v1379, 0.0
    %v1382 = vsel %vm219, %v1380, 0
    %1384 = vmatprep.subr.mxu0 0.0
    %1385 = vmatpush1.msra.mxu0 0.0
    %1386 = vmatprep.subr.mxu0 0.0
    %1387 = vmatpush1.msra.mxu0 0.0
    %1388 = vmatprep.subr.mxu0 0.0
    %1389 = vmatpush1.msra.mxu0 0.0
    %1390 = vmatprep.subr.mxu0 0.0
    %1391 = vmatpush1.msra.mxu0 0.0
    %1392 = vmatprep.subr.mxu0 0.0
    %1393 = vmatpush1.msra.mxu0 0.0
    %1394 = vmatprep.subr.mxu0 0.0
    %1395 = vmatpush1.msra.mxu0 0.0
    %1396 = vmatprep.subr.mxu0 0.0
    %1397 = vmatpush1.msra.mxu0 0.0
    %1398 = vmatprep.subr.mxu0 0.0
    %1399 = vmatpush1.msra.mxu0 0.0
    %1400 = vmatprep.subr.mxu0 0.0
    %1401 = vmatpush1.msra.mxu0 0.0
    %1402 = vmatprep.subr.mxu0 0.0
    %1403 = vmatpush1.msra.mxu0 0.0
    %1404 = vmatprep.subr.mxu0 0.0
    %1405 = vmatpush1.msra.mxu0 0.0
    %1406 = vmatprep.subr.mxu0 0.0
    %1407 = vmatpush1.msra.mxu0 0.0
    %1408 = vmatprep.subr.mxu0 0.0
    %1409 = vmatpush1.msra.mxu0 %v51
    %1410 = vmatprep.subr.mxu0 0.0
    %1411 = vmatpush1.msra.mxu0 %v50
    %1412 = vmatprep.subr.mxu0 0.0
    %1413 = vmatpush1.msra.mxu0 %v49
    %1414 = vmatprep.subr.mxu0 0.0
    %1415 = vmatpush1.msra.mxu0 %v48
    %1416 = vmatprep.subr.mxu0 0.0
    %1417 = vmatpush2.msra.mxu0 0.0
    %1418 = vmatprep.subr.mxu0 0.0
    %1419 = vmatpush2.msra.mxu0 0.0
    %1420 = vmatprep.subr.mxu0 0.0
    %1421 = vmatpush2.msra.mxu0 0.0
    %1422 = vmatprep.subr.mxu0 0.0
    %1423 = vmatpush2.msra.mxu0 0.0
    %1424 = vmatprep.subr.mxu0 0.0
    %1425 = vmatpush2.msra.mxu0 0.0
    %1426 = vmatprep.subr.mxu0 0.0
    %1427 = vmatpush2.msra.mxu0 0.0
    %1428 = vmatprep.subr.mxu0 0.0
    %1429 = vmatpush2.msra.mxu0 0.0
    %1430 = vmatprep.subr.mxu0 0.0
    %1431 = vmatpush2.msra.mxu0 0.0
    %1432 = vmatprep.subr.mxu0 0.0
    %1433 = vmatpush2.msra.mxu0 0.0
    %1434 = vmatprep.subr.mxu0 0.0
    %1435 = vmatpush2.msra.mxu0 0.0
    %1436 = vmatprep.subr.mxu0 0.0
    %1437 = vmatpush2.msra.mxu0 0.0
    %1438 = vmatprep.subr.mxu0 0.0
    %1439 = vmatpush2.msra.mxu0 0.0
    %1440 = vmatprep.subr.mxu0 0.0
    %1441 = vmatpush2.msra.mxu0 0.0
    %1442 = vmatprep.subr.mxu0 0.0
    %1443 = vmatpush2.msra.mxu0 0.0
    %1444 = vmatprep.subr.mxu0 0.0
    %1445 = vmatpush2.msra.mxu0 0.0
    %1446 = vmatprep.subr.mxu0 0.0
    %1447 = vmatpush2.msra.mxu0 0.0
    %1448 = vmatprep.mubr.f32.mxu0 0.0
    %1449 = vmatmul.mubr.f32.gmra.mxu0 %v1382
    %v1450 = vpop.f32.mrf.mxu0
    %v1451 = vadd.f32 %v64, %v1450
    %v1452 = vpop.f32.mrf.mxu0
    %1453 = vdwg.mxu0
    %v1454 = vmax.f32 %v1451, 0.0
    %1455 = vst.msk [vmem:[%s1303] sm:$0xff] %vm219, %v1454
    %v1456 = vld [vmem:[#allocation2] sm:$0xff]
    %v1457 = vld [vmem:[#allocation2 + $0x8] sm:$0xff]
    %v1458 = vld [vmem:[#allocation2 + $0x10] sm:$0xff]
    %v1459 = vld [vmem:[#allocation2 + $0x18] sm:$0xff]
    %v1460 = vld [vmem:[#allocation2 + $0x20] sm:$0xff]
    %v1461 = vld [vmem:[#allocation2 + $0x28] sm:$0xff]
    %v1462 = vld [vmem:[#allocation2 + $0x30] sm:$0xff]
    %v1463 = vld [vmem:[#allocation2 + $0x38] sm:$0xff]
    %v1464 = vld [vmem:[%s10] sm:$0xff]
    %v1465 = vld [vmem:[%s10 + $0x8] sm:$0xff]
    %v1466 = vld [vmem:[%s10 + $0x10] sm:$0xff]
    %v1467 = vld [vmem:[%s10 + $0x18] sm:$0xff]
    %v1468 = vld [vmem:[%s11] sm:$0x1]
    %v1470 = vlaneseq
    %v1471 = vshrl.u32 %v1470, 7
    %v1472 = vsub.s32 0, %v1471
    %v1473 = vrot.slane %v1468, %v1472
    %v1476 = vsel %vm219, %v1456, 0
    %v1479 = vsel %vm219, %v1457, 0
    %v1482 = vsel %vm219, %v1458, 0
    %v1485 = vsel %vm219, %v1459, 0
    %v1488 = vsel %vm219, %v1460, 0
    %v1491 = vsel %vm219, %v1461, 0
    %v1494 = vsel %vm219, %v1462, 0
    %v1497 = vsel %vm219, %v1463, 0
    %1499 = vmatprep.subr.mxu0 0.0
    %1500 = vmatpush1.msra.mxu0 0.0
    %1501 = vmatprep.subr.mxu0 0.0
    %1502 = vmatpush1.msra.mxu0 0.0
    %1503 = vmatprep.subr.mxu0 0.0
    %1504 = vmatpush1.msra.mxu0 0.0
    %1505 = vmatprep.subr.mxu0 0.0
    %1506 = vmatpush1.msra.mxu0 0.0
    %1507 = vmatprep.subr.mxu0 0.0
    %1508 = vmatpush1.msra.mxu0 0.0
    %1509 = vmatprep.subr.mxu0 0.0
    %1510 = vmatpush1.msra.mxu0 0.0
    %1511 = vmatprep.subr.mxu0 0.0
    %1512 = vmatpush1.msra.mxu0 0.0
    %1513 = vmatprep.subr.mxu0 0.0
    %1514 = vmatpush1.msra.mxu0 0.0
    %1515 = vmatprep.subr.mxu0 0.0
    %1516 = vmatpush1.msra.mxu0 0.0
    %1517 = vmatprep.subr.mxu0 0.0
    %1518 = vmatpush1.msra.mxu0 0.0
    %1519 = vmatprep.subr.mxu0 0.0
    %1520 = vmatpush1.msra.mxu0 0.0
    %1521 = vmatprep.subr.mxu0 0.0
    %1522 = vmatpush1.msra.mxu0 0.0
    %1523 = vmatprep.subr.mxu0 0.0
    %1524 = vmatpush1.msra.mxu0 %v1467
    %1525 = vmatprep.subr.mxu0 0.0
    %1526 = vmatpush1.msra.mxu0 %v1466
    %1527 = vmatprep.subr.mxu0 0.0
    %1528 = vmatpush1.msra.mxu0 %v1465
    %1529 = vmatprep.subr.mxu0 0.0
    %1530 = vmatpush1.msra.mxu0 %v1464
    %1531 = vmatprep.subr.mxu0 0.0
    %1532 = vmatpush2.msra.mxu0 0.0
    %1533 = vmatprep.subr.mxu0 0.0
    %1534 = vmatpush2.msra.mxu0 0.0
    %1535 = vmatprep.subr.mxu0 0.0
    %1536 = vmatpush2.msra.mxu0 0.0
    %1537 = vmatprep.subr.mxu0 0.0
    %1538 = vmatpush2.msra.mxu0 0.0
    %1539 = vmatprep.subr.mxu0 0.0
    %1540 = vmatpush2.msra.mxu0 0.0
    %1541 = vmatprep.subr.mxu0 0.0
    %1542 = vmatpush2.msra.mxu0 0.0
    %1543 = vmatprep.subr.mxu0 0.0
    %1544 = vmatpush2.msra.mxu0 0.0
    %1545 = vmatprep.subr.mxu0 0.0
    %1546 = vmatpush2.msra.mxu0 0.0
    %1547 = vmatprep.subr.mxu0 0.0
    %1548 = vmatpush2.msra.mxu0 0.0
    %1549 = vmatprep.subr.mxu0 0.0
    %1550 = vmatpush2.msra.mxu0 0.0
    %1551 = vmatprep.subr.mxu0 0.0
    %1552 = vmatpush2.msra.mxu0 0.0
    %1553 = vmatprep.subr.mxu0 0.0
    %1554 = vmatpush2.msra.mxu0 0.0
    %1555 = vmatprep.subr.mxu0 0.0
    %1556 = vmatpush2.msra.mxu0 0.0
    %1557 = vmatprep.subr.mxu0 0.0
    %1558 = vmatpush2.msra.mxu0 0.0
    %1559 = vmatprep.subr.mxu0 0.0
    %1560 = vmatpush2.msra.mxu0 0.0
    %1561 = vmatprep.subr.mxu0 0.0
    %1562 = vmatpush2.msra.mxu0 0.0
    %1563 = vmatprep.mubr.f32.mxu0 0.0
    %1564 = vmatmul.mubr.f32.gmra.mxu0 %v1476
    %v1565 = vpop.f32.mrf.mxu0
    %v1566 = vadd.f32 %v1473, %v1565
    %v1567 = vpop.f32.mrf.mxu0
    %1568 = vmatprep.mubr.f32.mxu0 0.0
    %1569 = vmatmul.mubr.f32.gmra.mxu0 %v1479
    %v1570 = vpop.f32.mrf.mxu0
    %v1571 = vadd.f32 %v1473, %v1570
    %v1572 = vpop.f32.mrf.mxu0
    %1573 = vmatprep.mubr.f32.mxu0 0.0
    %1574 = vmatmul.mubr.f32.gmra.mxu0 %v1482
    %v1575 = vpop.f32.mrf.mxu0
    %v1576 = vadd.f32 %v1473, %v1575
    %v1577 = vpop.f32.mrf.mxu0
    %1578 = vmatprep.mubr.f32.mxu0 0.0
    %1579 = vmatmul.mubr.f32.gmra.mxu0 %v1485
    %v1580 = vpop.f32.mrf.mxu0
    %v1581 = vadd.f32 %v1473, %v1580
    %v1582 = vpop.f32.mrf.mxu0
    %1583 = vmatprep.mubr.f32.mxu0 0.0
    %1584 = vmatmul.mubr.f32.gmra.mxu0 %v1488
    %v1585 = vpop.f32.mrf.mxu0
    %v1586 = vadd.f32 %v1473, %v1585
    %v1587 = vpop.f32.mrf.mxu0
    %1588 = vmatprep.mubr.f32.mxu0 0.0
    %1589 = vmatmul.mubr.f32.gmra.mxu0 %v1491
    %v1590 = vpop.f32.mrf.mxu0
    %v1591 = vadd.f32 %v1473, %v1590
    %v1592 = vpop.f32.mrf.mxu0
    %1593 = vmatprep.mubr.f32.mxu0 0.0
    %1594 = vmatmul.mubr.f32.gmra.mxu0 %v1494
    %v1595 = vpop.f32.mrf.mxu0
    %v1596 = vadd.f32 %v1473, %v1595
    %v1597 = vpop.f32.mrf.mxu0
    %1598 = vmatprep.mubr.f32.mxu0 0.0
    %1599 = vmatmul.mubr.f32.gmra.mxu0 %v1497
    %v1600 = vpop.f32.mrf.mxu0
    %v1601 = vadd.f32 %v1473, %v1600
    %v1602 = vpop.f32.mrf.mxu0
    %1603 = vdwg.mxu0
    %v1604 = vxor.u32 %v1566, 2147483648
    %v1605 = vxor.u32 %v1571, 2147483648
    %v1606 = vxor.u32 %v1576, 2147483648
    %v1607 = vxor.u32 %v1581, 2147483648
    %v1608 = vxor.u32 %v1586, 2147483648
    %v1609 = vxor.u32 %v1591, 2147483648
    %v1610 = vxor.u32 %v1596, 2147483648
    %v1611 = vxor.u32 %v1601, 2147483648
    %v1612 = vmul.f32 %v1604, 1.442695
    %v1613 = vpow.pop %v1612
    %v1614 = vmul.f32 %v1605, 1.442695
    %v1615 = vpow.pop %v1614
    %v1616 = vmul.f32 %v1606, 1.442695
    %v1617 = vpow.pop %v1616
    %v1618 = vmul.f32 %v1607, 1.442695
    %v1619 = vpow.pop %v1618
    %v1620 = vmul.f32 %v1608, 1.442695
    %v1621 = vpow.pop %v1620
    %v1622 = vmul.f32 %v1609, 1.442695
    %v1623 = vpow.pop %v1622
    %v1624 = vmul.f32 %v1610, 1.442695
    %v1625 = vpow.pop %v1624
    %v1626 = vmul.f32 %v1611, 1.442695
    %v1627 = vpow.pop %v1626
    %v1628 = vadd.f32 %v1613, 1.0
    %v1629 = vadd.f32 %v1615, 1.0
    %v1630 = vadd.f32 %v1617, 1.0
    %v1631 = vadd.f32 %v1619, 1.0
    %v1632 = vadd.f32 %v1621, 1.0
    %v1633 = vadd.f32 %v1623, 1.0
    %v1634 = vadd.f32 %v1625, 1.0
    %v1635 = vadd.f32 %v1627, 1.0
    %v1636 = vrcp.pop %v1628
    %v1637 = vmul.f32 1.0, %v1636
    %v1638 = vrcp.pop %v1629
    %v1639 = vmul.f32 1.0, %v1638
    %v1640 = vrcp.pop %v1630
    %v1641 = vmul.f32 1.0, %v1640
    %v1642 = vrcp.pop %v1631
    %v1643 = vmul.f32 1.0, %v1642
    %v1644 = vrcp.pop %v1632
    %v1645 = vmul.f32 1.0, %v1644
    %v1646 = vrcp.pop %v1633
    %v1647 = vmul.f32 1.0, %v1646
    %v1648 = vrcp.pop %v1634
    %v1649 = vmul.f32 1.0, %v1648
    %v1650 = vrcp.pop %v1635
    %v1651 = vmul.f32 1.0, %v1650
    %v1652 = vld [vmem:[%s1] sm:$0xff]
    %v1653 = vld [vmem:[%s1 + $0x8] sm:$0xff]
    %v1654 = vld [vmem:[%s1 + $0x10] sm:$0xff]
    %v1655 = vld [vmem:[%s1 + $0x18] sm:$0xff]
    %v1656 = vld [vmem:[%s1 + $0x20] sm:$0xff]
    %v1657 = vld [vmem:[%s1 + $0x28] sm:$0xff]
    %v1658 = vld [vmem:[%s1 + $0x30] sm:$0xff]
    %v1659 = vld [vmem:[%s1 + $0x38] sm:$0xff]
    %v1660 = vmul.f32 %v1637, %v1652
    %v1661 = vmul.f32 %v1639, %v1653
    %v1662 = vmul.f32 %v1641, %v1654
    %v1663 = vmul.f32 %v1643, %v1655
    %v1664 = vmul.f32 %v1645, %v1656
    %v1665 = vmul.f32 %v1647, %v1657
    %v1666 = vmul.f32 %v1649, %v1658
    %v1667 = vmul.f32 %v1651, %v1659
    %vm1668 = vcmask 130048
    %v1669 = vsel %vm1668, %v1660, 0.0
    %1670 = vadd.xlane.f32.xlu0 %v1669
    %v1671 = vpop.xlane.xlu0 %1670
    %v1672 = vsel %vm1668, %v1661, 0.0
    %1673 = vadd.xlane.f32.xlu0 %v1672
    %v1674 = vpop.xlane.xlu0 %1673
    %v1675 = vsel %vm1668, %v1662, 0.0
    %1676 = vadd.xlane.f32.xlu0 %v1675
    %v1677 = vpop.xlane.xlu0 %1676
    %v1678 = vsel %vm1668, %v1663, 0.0
    %1679 = vadd.xlane.f32.xlu0 %v1678
    %v1680 = vpop.xlane.xlu0 %1679
    %v1681 = vsel %vm1668, %v1664, 0.0
    %1682 = vadd.xlane.f32.xlu0 %v1681
    %v1683 = vpop.xlane.xlu0 %1682
    %v1684 = vsel %vm1668, %v1665, 0.0
    %1685 = vadd.xlane.f32.xlu0 %v1684
    %v1686 = vpop.xlane.xlu0 %1685
    %v1687 = vsel %vm1668, %v1666, 0.0
    %1688 = vadd.xlane.f32.xlu0 %v1687
    %v1689 = vpop.xlane.xlu0 %1688
    %v1690 = vsel %vm1668, %v1667, 0.0
    %1691 = vadd.xlane.f32.xlu0 %v1690
    %v1692 = vpop.xlane.xlu0 %1691
    %v1693 = vld [vmem:[%s2] sm:$0xff]
    %v1694 = vld [vmem:[%s2 + $0x8] sm:$0xff]
    %v1695 = vld [vmem:[%s2 + $0x10] sm:$0xff]
    %v1696 = vld [vmem:[%s2 + $0x18] sm:$0xff]
    %v1697 = vld [vmem:[%s2 + $0x20] sm:$0xff]
    %v1698 = vld [vmem:[%s2 + $0x28] sm:$0xff]
    %v1699 = vld [vmem:[%s2 + $0x30] sm:$0xff]
    %v1700 = vld [vmem:[%s2 + $0x38] sm:$0xff]
    %v1701 = vlog2.pop %v1671
    %v1702 = vmul.f32 %v1701, 0.6931472
    %v1703 = vlog2.pop %v1674
    %v1704 = vmul.f32 %v1703, 0.6931472
    %v1705 = vlog2.pop %v1677
    %v1706 = vmul.f32 %v1705, 0.6931472
    %v1707 = vlog2.pop %v1680
    %v1708 = vmul.f32 %v1707, 0.6931472
    %v1709 = vlog2.pop %v1683
    %v1710 = vmul.f32 %v1709, 0.6931472
    %v1711 = vlog2.pop %v1686
    %v1712 = vmul.f32 %v1711, 0.6931472
    %v1713 = vlog2.pop %v1689
    %v1714 = vmul.f32 %v1713, 0.6931472
    %v1715 = vlog2.pop %v1692
    %v1716 = vmul.f32 %v1715, 0.6931472
    %v1717 = vmax.f32 %v1702, -100.0
    %v1718 = vmax.f32 %v1704, -100.0
    %v1719 = vmax.f32 %v1706, -100.0
    %v1720 = vmax.f32 %v1708, -100.0
    %v1721 = vmax.f32 %v1710, -100.0
    %v1722 = vmax.f32 %v1712, -100.0
    %v1723 = vmax.f32 %v1714, -100.0
    %v1724 = vmax.f32 %v1716, -100.0
    %v1725 = vsub.f32 1.0, %v1671
    %v1726 = vsub.f32 1.0, %v1674
    %v1727 = vsub.f32 1.0, %v1677
    %v1728 = vsub.f32 1.0, %v1680
    %v1729 = vsub.f32 1.0, %v1683
    %v1730 = vsub.f32 1.0, %v1686
    %v1731 = vsub.f32 1.0, %v1689
    %v1732 = vsub.f32 1.0, %v1692
    %v1733 = vlog2.pop %v1725
    %v1734 = vmul.f32 %v1733, 0.6931472
    %v1735 = vlog2.pop %v1726
    %v1736 = vmul.f32 %v1735, 0.6931472
    %v1737 = vlog2.pop %v1727
    %v1738 = vmul.f32 %v1737, 0.6931472
    %v1739 = vlog2.pop %v1728
    %v1740 = vmul.f32 %v1739, 0.6931472
    %v1741 = vlog2.pop %v1729
    %v1742 = vmul.f32 %v1741, 0.6931472
    %v1743 = vlog2.pop %v1730
    %v1744 = vmul.f32 %v1743, 0.6931472
    %v1745 = vlog2.pop %v1731
    %v1746 = vmul.f32 %v1745, 0.6931472
    %v1747 = vlog2.pop %v1732
    %v1748 = vmul.f32 %v1747, 0.6931472
    %v1749 = vmax.f32 %v1734, -100.0
    %v1750 = vmax.f32 %v1736, -100.0
    %v1751 = vmax.f32 %v1738, -100.0
    %v1752 = vmax.f32 %v1740, -100.0
    %v1753 = vmax.f32 %v1742, -100.0
    %v1754 = vmax.f32 %v1744, -100.0
    %v1755 = vmax.f32 %v1746, -100.0
    %v1756 = vmax.f32 %v1748, -100.0
    %v1757 = vmul.f32 %v1693, %v1717
    %v1758 = vmul.f32 %v1694, %v1718
    %v1759 = vmul.f32 %v1695, %v1719
    %v1760 = vmul.f32 %v1696, %v1720
    %v1761 = vmul.f32 %v1697, %v1721
    %v1762 = vmul.f32 %v1698, %v1722
    %v1763 = vmul.f32 %v1699, %v1723
    %v1764 = vmul.f32 %v1700, %v1724
    %v1765 = vsub.f32 1.0, %v1693
    %v1766 = vsub.f32 1.0, %v1694
    %v1767 = vsub.f32 1.0, %v1695
    %v1768 = vsub.f32 1.0, %v1696
    %v1769 = vsub.f32 1.0, %v1697
    %v1770 = vsub.f32 1.0, %v1698
    %v1771 = vsub.f32 1.0, %v1699
    %v1772 = vsub.f32 1.0, %v1700
    %v1773 = vmul.f32 %v1765, %v1749
    %v1774 = vmul.f32 %v1766, %v1750
    %v1775 = vmul.f32 %v1767, %v1751
    %v1776 = vmul.f32 %v1768, %v1752
    %v1777 = vmul.f32 %v1769, %v1753
    %v1778 = vmul.f32 %v1770, %v1754
    %v1779 = vmul.f32 %v1771, %v1755
    %v1780 = vmul.f32 %v1772, %v1756
    %v1781 = vadd.f32 %v1757, %v1773
    %v1782 = vadd.f32 %v1758, %v1774
    %v1783 = vadd.f32 %v1759, %v1775
    %v1784 = vadd.f32 %v1760, %v1776
    %v1785 = vadd.f32 %v1761, %v1777
    %v1786 = vadd.f32 %v1762, %v1778
    %v1787 = vadd.f32 %v1763, %v1779
    %v1788 = vadd.f32 %v1764, %v1780
    %v1789 = vsub.f32 0.0, %v1781
    %v1790 = vsub.f32 0.0, %v1782
    %v1791 = vsub.f32 0.0, %v1783
    %v1792 = vsub.f32 0.0, %v1784
    %v1793 = vsub.f32 0.0, %v1785
    %v1794 = vsub.f32 0.0, %v1786
    %v1795 = vsub.f32 0.0, %v1787
    %v1796 = vsub.f32 0.0, %v1788
    %vm1797 = vcmask 7168
    %1798 = vst.msk [vmem:[%s13] sm:$0xff] %vm1797, %v1671
    %1799 = vst.msk [vmem:[%s13 + $0x8] sm:$0xff] %vm1797, %v1674
    %1800 = vst.msk [vmem:[%s13 + $0x10] sm:$0xff] %vm1797, %v1677
    %1801 = vst.msk [vmem:[%s13 + $0x18] sm:$0xff] %vm1797, %v1680
    %1802 = vst.msk [vmem:[%s13 + $0x20] sm:$0xff] %vm1797, %v1683
    %1803 = vst.msk [vmem:[%s13 + $0x28] sm:$0xff] %vm1797, %v1686
    %1804 = vst.msk [vmem:[%s13 + $0x30] sm:$0xff] %vm1797, %v1689
    %1805 = vst.msk [vmem:[%s13 + $0x38] sm:$0xff] %vm1797, %v1692
    %v1806 = vsel %vm1797, %v1789, 0.0
    %v1807 = vsel %vm1797, %v1790, 0.0
    %v1808 = vadd.f32 %v1806, %v1807
    %v1809 = vsel %vm1797, %v1791, 0.0
    %v1810 = vadd.f32 %v1808, %v1809
    %v1811 = vsel %vm1797, %v1792, 0.0
    %v1812 = vadd.f32 %v1810, %v1811
    %v1813 = vsel %vm1797, %v1793, 0.0
    %v1814 = vadd.f32 %v1812, %v1813
    %v1815 = vsel %vm1797, %v1794, 0.0
    %v1816 = vadd.f32 %v1814, %v1815
    %v1817 = vsel %vm1797, %v1795, 0.0
    %v1818 = vadd.f32 %v1816, %v1817
    %v1819 = vsel %vm1797, %v1796, 0.0
    %v1820 = vadd.f32 %v1818, %v1819
    %1821 = vadd.xlane.f32.xlu0 %v1820
    %v1822 = vpop.xlane.xlu0 %1821
    %v1823 = vrot.slane %v1822, 4
    %v1824 = vadd.f32 %v1822, %v1823
    %v1825 = vrot.slane %v1824, 2
    %v1826 = vadd.f32 %v1824, %v1825
    %v1827 = vrot.slane %v1826, 1
    %v1828 = vadd.f32 %v1826, %v1827
    %s1829 = vtos %v1828
    %v1830 = vstv %s1829
    %vm1831 = vcmask 0
    %1832 = vst.msk [vmem:[#allocation3] sm:$0x1] %vm1831, %v1830
    // Predicated region
    $region50: #{tpu_custom_call.1} parent=1 // pred_check
      _
    $region51: #{tpu_custom_call.1} parent=1 // pred_check_branch
      %1834 = sbr.rel (0) target = $region53
    $region52: #{tpu_custom_call.1} parent=1 // pred_region
      %s1836 = ssub.s32 16, 16
      %1837 = vsyncadd [#allocation4], %s1836
      %s1839 = sshll.u32 [#allocation3], 4
      %s1840 = int_to_ptr.vmem [resolvable:$true] %s1839
      %1842 = dma.vmem_to_hbm [thread:$0]  %s1840, 16, %s12, [#allocation4]
    $region53: #{tpu_custom_call.1} parent=1 // pred_fallthru
      _
    // Predicated region
    $region54: #{tpu_custom_call.1} parent=1 // pred_check
      _
    $region55: #{tpu_custom_call.1} parent=1 // pred_check_branch
      %1844 = sbr.rel (0) target = $region57
    $region56: #{tpu_custom_call.1} parent=1 // pred_region
      _
    $region57: #{tpu_custom_call.1} parent=1 // pred_fallthru
      _
    // Predicated region
    $region58: #{tpu_custom_call.1} parent=1 // pred_check
      _
    $region59: #{tpu_custom_call.1} parent=1 // pred_check_branch
      %1846 = sbr.rel (0) target = $region61
    $region60: #{tpu_custom_call.1} parent=1 // pred_region
      %1847 = dma.done [#allocation4], 16
    $region61: #{tpu_custom_call.1} parent=1 // pred_fallthru
      _
    // Predicated region
    $region62: #{tpu_custom_call.1} parent=1 // pred_check
      _
    $region63: #{tpu_custom_call.1} parent=1 // pred_check_branch
      %1849 = sbr.rel (0) target = $region65
    $region64: #{tpu_custom_call.1} parent=1 // pred_region
      _
    $region65: #{tpu_custom_call.1} parent=1 // pred_fallthru
      _
    %1850 = vsyncpa [#allocation4], 1

</llo_original>
